<compile_context>
chip_gen: v7x
topology: tpu7x:2x2x1
jax: 0.10.0
libtpu: 0.0.40
codegen_flags: <defaults>
</compile_context>

<pallas_src>
from functools import partial

import jax
import jax.numpy as jnp
from jax.experimental import pallas as pl
from jax.experimental.pallas import tpu as pltpu


def rnnlm_kernel(x_ref, h0_ref, wih0_ref, wih_hi_ref, whh_ref, vw_ref,
                 y_ref, hT_ref, top_buf, *, L, T, B):
    """Whole-model forward: stacked tanh-RNN (wavefront) + output proj + softmax.

    Layouts (all pre-arranged by the wrapper, no in-kernel transposes):
      x_ref       : (T*B, V)    time-major flattened input features
      h0_ref      : (L, B, H)
      wih0_ref    : (V, H)      = W_ih(layer 0)^T
      wih_hi_ref  : (L-1, H, H) = W_ih(layer>0)^T
      whh_ref     : (L, H, H)   = W_hh^T
      vw_ref      : (H, V)      = V^T (output projection)
      y_ref       : (T*B, V)    softmax probabilities (time-major)
      hT_ref      : (L, B, H)   final hidden state per layer
      top_buf     : (T*B, H)    VMEM scratch holding the top layer's outputs
    """
    # Hoist per-layer weight loads out of the wavefront loop (1 vreg each).
    whh = [whh_ref[l] for l in range(L)]              # (H, H), pre-transposed
    wih_hi = [wih_hi_ref[l] for l in range(L - 1)]    # (H, H), pre-transposed

    # Layer-0 input projection, hoisted as one bulk MXU matmul (off-chain).
    xw0 = jnp.dot(x_ref[...], wih0_ref[...],
                  preferred_element_type=jnp.float32)              # (T*B, H)

    # Register-resident hidden state per layer.
    h = [h0_ref[l] for l in range(L)]                               # (B, H)

    # Wavefront over (layer, time): at step s, layer l handles t = s - l.
    # Every read inside a step uses only step-(s-1) values, so the dependent
    # chain is T + L - 1 matmul+tanh latencies instead of L * T, and each step
    # issues up to 2*L independent small MXU matmuls back-to-back.
    # TODO(synk): for large T convert to lax.fori_loop(..., unroll=small) with
    # per-step xw0 reads from a VMEM ref via pl.ds instead of value slices.
    for s in range(T + L - 1):
        h_old = list(h)
        for l in range(L):
            t = s - l
            if 0 <= t < T:
                if l == 0:
                    inp = xw0[t * B:(t + 1) * B]                    # hoisted proj
                else:
                    # Input projection straight from the previous layer's
                    # register output of the previous wavefront step.
                    inp = jnp.dot(h_old[l - 1], wih_hi[l - 1],
                                  preferred_element_type=jnp.float32)
                h[l] = jnp.tanh(
                    inp + jnp.dot(h_old[l], whh[l],
                                  preferred_element_type=jnp.float32))
                if l == L - 1:
                    # Not a data dependence of any later wavefront step: this
                    # store overlaps with subsequent matmuls and only feeds the
                    # bulk output projection below.
                    top_buf[t * B:(t + 1) * B, :] = h[l]

    for l in range(L):
        hT_ref[l] = h[l]                                            # h_l(T-1)

    # Output projection + softmax over vocab, lane-dense 2D (T*B, V) slab.
    logits = jnp.dot(top_buf[...], vw_ref[...],
                     preferred_element_type=jnp.float32)            # (T*B, V)
    m = jnp.max(logits, axis=-1, keepdims=True)
    e = jnp.exp(logits - m)
    ssum = jnp.sum(e, axis=-1, keepdims=True)
    r = pl.reciprocal(ssum, approx=True)                            # EUP slot
    r = r * (2.0 - ssum * r)                                        # Newton step -> ~fp32 exact
    y_ref[...] = e * r
    # TODO(synk): at realistic V/T/B, split projection+softmax into a row-tiled
    # grid (dimension_semantics=("parallel",), lane-dense out_spec, resident
    # (H,V) weight) with generation-specific VMEM budgets (v7x 64 MiB phys,
    # v5e 16 MiB scoped default, vmem_limit_bytes set explicitly), and consider
    # bf16 MXU inputs with f32 accumulation for the bulk matmuls.


@jax.jit
def rnnlm_forward(x, h0, w_ih0, w_ih_hi, w_hh, v_w):
    B, T, V = x.shape
    L, _, H = h0.shape

    # Layout plumbing in plain XLA (fused / free at the XLA level):
    x_tm = jnp.transpose(x, (1, 0, 2)).reshape(T * B, V)      # time-major rows
    w_ih0_t = w_ih0.T                                         # (V, H)
    w_ih_hi_t = jnp.transpose(w_ih_hi, (0, 2, 1))             # (L-1, H, H)
    w_hh_t = jnp.transpose(w_hh, (0, 2, 1))                   # (L, H, H)
    v_w_t = v_w.T                                             # (H, V)

    kernel = partial(rnnlm_kernel, L=L, T=T, B=B)
    vmem = pl.BlockSpec(memory_space=pltpu.MemorySpace.VMEM)
    y_flat, hT = pl.pallas_call(
        kernel,
        out_shape=(jax.ShapeDtypeStruct((T * B, V), jnp.float32),
                   jax.ShapeDtypeStruct((L, B, H), jnp.float32)),
        in_specs=[vmem] * 6,
        out_specs=(vmem, vmem),
        scratch_shapes=[pltpu.VMEM((T * B, H), jnp.float32)],
    )(x_tm, h0, w_ih0_t, w_ih_hi_t, w_hh_t, v_w_t)

    # Back to batch-first (B, T, V) in the wrapper (free layout plumbing).
    y = jnp.transpose(y_flat.reshape(T, B, V), (1, 0, 2))
    return y, hT


def rnnlm_reference(x, h0, w_ih0, w_ih_hi, w_hh, v_w):
    """Pure-JAX reference mirroring torch.nn.RNN + Linear + softmax."""
    L = h0.shape[0]
    T = x.shape[1]
    layer_in = x
    h_finals = []
    for layer in range(L):
        wih = w_ih0 if layer == 0 else w_ih_hi[layer - 1]
        whh = w_hh[layer]
        h = h0[layer]
        outs = []
        for t in range(T):
            h = jnp.tanh(layer_in[:, t, :] @ wih.T + h @ whh.T)
            outs.append(h)
        layer_in = jnp.stack(outs, axis=1)
        h_finals.append(h)
    logits = jnp.einsum('bth,vh->btv', layer_in, v_w)
    return jax.nn.softmax(logits, axis=2), jnp.stack(h_finals, axis=0)


if __name__ == "__main__":
    # params = {'v': 32, 'h': 32, 'l': 2}; batch=2, seq=8
    B, T, V, H, L = 2, 8, 32, 32, 2

    key = jax.random.PRNGKey(0)
    ks = jax.random.split(key, 6)
    scale = 1.0 / jnp.sqrt(H)
    x       = jax.random.normal(ks[0], (B, T, V), dtype=jnp.float32)
    h0      = jax.random.normal(ks[1], (L, B, H), dtype=jnp.float32) * 0.1
    w_ih0   = jax.random.uniform(ks[2], (H, V), minval=-scale, maxval=scale,
                                 dtype=jnp.float32)
    w_ih_hi = jax.random.uniform(ks[3], (L - 1, H, H), minval=-scale,
                                 maxval=scale, dtype=jnp.float32)
    w_hh    = jax.random.uniform(ks[4], (L, H, H), minval=-scale, maxval=scale,
                                 dtype=jnp.float32)
    v_w     = jax.random.uniform(ks[5], (V, H), minval=-scale, maxval=scale,
                                 dtype=jnp.float32)

    y, hT = rnnlm_forward(x, h0, w_ih0, w_ih_hi, w_hh, v_w)
    jax.block_until_ready((y, hT))

    y_ref, hT_ref = rnnlm_reference(x, h0, w_ih0, w_ih_hi, w_hh, v_w)
    assert jnp.allclose(y, y_ref, atol=1e-5, rtol=1e-5), "softmax output mismatch"
    assert jnp.allclose(hT, hT_ref, atol=1e-5, rtol=1e-5), "hidden state mismatch"
    # softmax rows must sum to 1
    assert jnp.allclose(jnp.sum(y, axis=2), 1.0, atol=1e-5)

    print("KERNEL_OK")
</pallas_src>

<mosaic_0001>
module attributes {stable_mosaic.version = 11 : i64} {
  func.func @rnnlm_kernel(%arg0: memref<16x32xf32, #tpu.memory_space<vmem>>, %arg1: memref<2x2x32xf32, #tpu.memory_space<vmem>>, %arg2: memref<32x32xf32, #tpu.memory_space<vmem>>, %arg3: memref<1x32x32xf32, #tpu.memory_space<vmem>>, %arg4: memref<2x32x32xf32, #tpu.memory_space<vmem>>, %arg5: memref<32x32xf32, #tpu.memory_space<vmem>>, %arg6: memref<16x32xf32, #tpu.memory_space<vmem>>, %arg7: memref<2x2x32xf32, #tpu.memory_space<vmem>>, %arg8: memref<16x32xf32, #tpu.memory_space<vmem>>) attributes {dimension_semantics = [], scalar_prefetch = 0 : i64, scratch_operands = 1 : i64, tpu.core_type = #tpu.core_type<tc>} {
    %c0 = arith.constant 0 : index
    %c0_0 = arith.constant 0 : index
    %c0_1 = arith.constant 0 : index
    %0 = vector.load %arg4[%c0, %c0_0, %c0_1] : memref<2x32x32xf32, #tpu.memory_space<vmem>>, vector<1x32x32xf32>
    %1 = vector.shape_cast %0 : vector<1x32x32xf32> to vector<32x32xf32>
    %c1 = arith.constant 1 : index
    %c0_2 = arith.constant 0 : index
    %c0_3 = arith.constant 0 : index
    %2 = vector.load %arg4[%c1, %c0_2, %c0_3] : memref<2x32x32xf32, #tpu.memory_space<vmem>>, vector<1x32x32xf32>
    %3 = vector.shape_cast %2 : vector<1x32x32xf32> to vector<32x32xf32>
    %c0_4 = arith.constant 0 : index
    %c0_5 = arith.constant 0 : index
    %c0_6 = arith.constant 0 : index
    %4 = vector.load %arg3[%c0_4, %c0_5, %c0_6] : memref<1x32x32xf32, #tpu.memory_space<vmem>>, vector<1x32x32xf32>
    %5 = vector.shape_cast %4 : vector<1x32x32xf32> to vector<32x32xf32>
    %c0_7 = arith.constant 0 : index
    %c0_8 = arith.constant 0 : index
    %6 = vector.load %arg0[%c0_7, %c0_8] : memref<16x32xf32, #tpu.memory_space<vmem>>, vector<16x32xf32>
    %c0_9 = arith.constant 0 : index
    %c0_10 = arith.constant 0 : index
    %7 = vector.load %arg2[%c0_9, %c0_10] : memref<32x32xf32, #tpu.memory_space<vmem>>, vector<32x32xf32>
    %cst = arith.constant dense<0.000000e+00> : vector<16x32xf32>
    %8 = tpu.matmul %6, %7, %cst {dimension_numbers = #tpu.dot_dimension_numbers<[1], [0], [0], [1], [0, 0, 1, 1], [], []>} : vector<16x32xf32>, vector<32x32xf32>, vector<16x32xf32> -> vector<16x32xf32>
    %c0_11 = arith.constant 0 : index
    %c0_12 = arith.constant 0 : index
    %c0_13 = arith.constant 0 : index
    %9 = vector.load %arg1[%c0_11, %c0_12, %c0_13] : memref<2x2x32xf32, #tpu.memory_space<vmem>>, vector<1x2x32xf32>
    %10 = vector.shape_cast %9 : vector<1x2x32xf32> to vector<2x32xf32>
    %c1_14 = arith.constant 1 : index
    %c0_15 = arith.constant 0 : index
    %c0_16 = arith.constant 0 : index
    %11 = vector.load %arg1[%c1_14, %c0_15, %c0_16] : memref<2x2x32xf32, #tpu.memory_space<vmem>>, vector<1x2x32xf32>
    %12 = vector.shape_cast %11 : vector<1x2x32xf32> to vector<2x32xf32>
    %13 = vector.extract_strided_slice %8 {offsets = [0, 0], sizes = [2, 32], strides = [1, 1]} : vector<16x32xf32> to vector<2x32xf32>
    %cst_17 = arith.constant dense<0.000000e+00> : vector<2x32xf32>
    %14 = tpu.matmul %10, %1, %cst_17 {dimension_numbers = #tpu.dot_dimension_numbers<[1], [0], [0], [1], [0, 0, 1, 1], [], []>} : vector<2x32xf32>, vector<32x32xf32>, vector<2x32xf32> -> vector<2x32xf32>
    %15 = arith.addf %13, %14 : vector<2x32xf32>
    %16 = math.tanh %15 : vector<2x32xf32>
    %17 = vector.extract_strided_slice %8 {offsets = [2, 0], sizes = [2, 32], strides = [1, 1]} : vector<16x32xf32> to vector<2x32xf32>
    %cst_18 = arith.constant dense<0.000000e+00> : vector<2x32xf32>
    %18 = tpu.matmul %16, %1, %cst_18 {dimension_numbers = #tpu.dot_dimension_numbers<[1], [0], [0], [1], [0, 0, 1, 1], [], []>} : vector<2x32xf32>, vector<32x32xf32>, vector<2x32xf32> -> vector<2x32xf32>
    %19 = arith.addf %17, %18 : vector<2x32xf32>
    %20 = math.tanh %19 : vector<2x32xf32>
    %cst_19 = arith.constant dense<0.000000e+00> : vector<2x32xf32>
    %21 = tpu.matmul %16, %5, %cst_19 {dimension_numbers = #tpu.dot_dimension_numbers<[1], [0], [0], [1], [0, 0, 1, 1], [], []>} : vector<2x32xf32>, vector<32x32xf32>, vector<2x32xf32> -> vector<2x32xf32>
    %cst_20 = arith.constant dense<0.000000e+00> : vector<2x32xf32>
    %22 = tpu.matmul %12, %3, %cst_20 {dimension_numbers = #tpu.dot_dimension_numbers<[1], [0], [0], [1], [0, 0, 1, 1], [], []>} : vector<2x32xf32>, vector<32x32xf32>, vector<2x32xf32> -> vector<2x32xf32>
    %23 = arith.addf %21, %22 : vector<2x32xf32>
    %24 = math.tanh %23 : vector<2x32xf32>
    %c0_21 = arith.constant 0 : index
    %c0_22 = arith.constant 0 : index
    %25 = vector.load %arg8[%c0_21, %c0_22] : memref<16x32xf32, #tpu.memory_space<vmem>>, vector<2x32xf32>
    tpu.vector_store %arg8[%c0_21, %c0_22], %24 {strides = array<i32>} : memref<16x32xf32, #tpu.memory_space<vmem>>, vector<2x32xf32>,
    %26 = vector.extract_strided_slice %8 {offsets = [4, 0], sizes = [2, 32], strides = [1, 1]} : vector<16x32xf32> to vector<2x32xf32>
    %cst_23 = arith.constant dense<0.000000e+00> : vector<2x32xf32>
    %27 = tpu.matmul %20, %1, %cst_23 {dimension_numbers = #tpu.dot_dimension_numbers<[1], [0], [0], [1], [0, 0, 1, 1], [], []>} : vector<2x32xf32>, vector<32x32xf32>, vector<2x32xf32> -> vector<2x32xf32>
    %28 = arith.addf %26, %27 : vector<2x32xf32>
    %29 = math.tanh %28 : vector<2x32xf32>
    %cst_24 = arith.constant dense<0.000000e+00> : vector<2x32xf32>
    %30 = tpu.matmul %20, %5, %cst_24 {dimension_numbers = #tpu.dot_dimension_numbers<[1], [0], [0], [1], [0, 0, 1, 1], [], []>} : vector<2x32xf32>, vector<32x32xf32>, vector<2x32xf32> -> vector<2x32xf32>
    %cst_25 = arith.constant dense<0.000000e+00> : vector<2x32xf32>
    %31 = tpu.matmul %24, %3, %cst_25 {dimension_numbers = #tpu.dot_dimension_numbers<[1], [0], [0], [1], [0, 0, 1, 1], [], []>} : vector<2x32xf32>, vector<32x32xf32>, vector<2x32xf32> -> vector<2x32xf32>
    %32 = arith.addf %30, %31 : vector<2x32xf32>
    %33 = math.tanh %32 : vector<2x32xf32>
    %c2 = arith.constant 2 : index
    %c0_26 = arith.constant 0 : index
    %34 = vector.load %arg8[%c2, %c0_26] : memref<16x32xf32, #tpu.memory_space<vmem>>, vector<2x32xf32>
    tpu.vector_store %arg8[%c2, %c0_26], %33 {strides = array<i32>} : memref<16x32xf32, #tpu.memory_space<vmem>>, vector<2x32xf32>,
    %35 = vector.extract_strided_slice %8 {offsets = [6, 0], sizes = [2, 32], strides = [1, 1]} : vector<16x32xf32> to vector<2x32xf32>
    %cst_27 = arith.constant dense<0.000000e+00> : vector<2x32xf32>
    %36 = tpu.matmul %29, %1, %cst_27 {dimension_numbers = #tpu.dot_dimension_numbers<[1], [0], [0], [1], [0, 0, 1, 1], [], []>} : vector<2x32xf32>, vector<32x32xf32>, vector<2x32xf32> -> vector<2x32xf32>
    %37 = arith.addf %35, %36 : vector<2x32xf32>
    %38 = math.tanh %37 : vector<2x32xf32>
    %cst_28 = arith.constant dense<0.000000e+00> : vector<2x32xf32>
    %39 = tpu.matmul %29, %5, %cst_28 {dimension_numbers = #tpu.dot_dimension_numbers<[1], [0], [0], [1], [0, 0, 1, 1], [], []>} : vector<2x32xf32>, vector<32x32xf32>, vector<2x32xf32> -> vector<2x32xf32>
    %cst_29 = arith.constant dense<0.000000e+00> : vector<2x32xf32>
    %40 = tpu.matmul %33, %3, %cst_29 {dimension_numbers = #tpu.dot_dimension_numbers<[1], [0], [0], [1], [0, 0, 1, 1], [], []>} : vector<2x32xf32>, vector<32x32xf32>, vector<2x32xf32> -> vector<2x32xf32>
    %41 = arith.addf %39, %40 : vector<2x32xf32>
    %42 = math.tanh %41 : vector<2x32xf32>
    %c4 = arith.constant 4 : index
    %c0_30 = arith.constant 0 : index
    %43 = vector.load %arg8[%c4, %c0_30] : memref<16x32xf32, #tpu.memory_space<vmem>>, vector<2x32xf32>
    tpu.vector_store %arg8[%c4, %c0_30], %42 {strides = array<i32>} : memref<16x32xf32, #tpu.memory_space<vmem>>, vector<2x32xf32>,
    %44 = vector.extract_strided_slice %8 {offsets = [8, 0], sizes = [2, 32], strides = [1, 1]} : vector<16x32xf32> to vector<2x32xf32>
    %cst_31 = arith.constant dense<0.000000e+00> : vector<2x32xf32>
    %45 = tpu.matmul %38, %1, %cst_31 {dimension_numbers = #tpu.dot_dimension_numbers<[1], [0], [0], [1], [0, 0, 1, 1], [], []>} : vector<2x32xf32>, vector<32x32xf32>, vector<2x32xf32> -> vector<2x32xf32>
    %46 = arith.addf %44, %45 : vector<2x32xf32>
    %47 = math.tanh %46 : vector<2x32xf32>
    %cst_32 = arith.constant dense<0.000000e+00> : vector<2x32xf32>
    %48 = tpu.matmul %38, %5, %cst_32 {dimension_numbers = #tpu.dot_dimension_numbers<[1], [0], [0], [1], [0, 0, 1, 1], [], []>} : vector<2x32xf32>, vector<32x32xf32>, vector<2x32xf32> -> vector<2x32xf32>
    %cst_33 = arith.constant dense<0.000000e+00> : vector<2x32xf32>
    %49 = tpu.matmul %42, %3, %cst_33 {dimension_numbers = #tpu.dot_dimension_numbers<[1], [0], [0], [1], [0, 0, 1, 1], [], []>} : vector<2x32xf32>, vector<32x32xf32>, vector<2x32xf32> -> vector<2x32xf32>
    %50 = arith.addf %48, %49 : vector<2x32xf32>
    %51 = math.tanh %50 : vector<2x32xf32>
    %c6 = arith.constant 6 : index
    %c0_34 = arith.constant 0 : index
    %52 = vector.load %arg8[%c6, %c0_34] : memref<16x32xf32, #tpu.memory_space<vmem>>, vector<2x32xf32>
    tpu.vector_store %arg8[%c6, %c0_34], %51 {strides = array<i32>} : memref<16x32xf32, #tpu.memory_space<vmem>>, vector<2x32xf32>,
    %53 = vector.extract_strided_slice %8 {offsets = [10, 0], sizes = [2, 32], strides = [1, 1]} : vector<16x32xf32> to vector<2x32xf32>
    %cst_35 = arith.constant dense<0.000000e+00> : vector<2x32xf32>
    %54 = tpu.matmul %47, %1, %cst_35 {dimension_numbers = #tpu.dot_dimension_numbers<[1], [0], [0], [1], [0, 0, 1, 1], [], []>} : vector<2x32xf32>, vector<32x32xf32>, vector<2x32xf32> -> vector<2x32xf32>
    %55 = arith.addf %53, %54 : vector<2x32xf32>
    %56 = math.tanh %55 : vector<2x32xf32>
    %cst_36 = arith.constant dense<0.000000e+00> : vector<2x32xf32>
    %57 = tpu.matmul %47, %5, %cst_36 {dimension_numbers = #tpu.dot_dimension_numbers<[1], [0], [0], [1], [0, 0, 1, 1], [], []>} : vector<2x32xf32>, vector<32x32xf32>, vector<2x32xf32> -> vector<2x32xf32>
    %cst_37 = arith.constant dense<0.000000e+00> : vector<2x32xf32>
    %58 = tpu.matmul %51, %3, %cst_37 {dimension_numbers = #tpu.dot_dimension_numbers<[1], [0], [0], [1], [0, 0, 1, 1], [], []>} : vector<2x32xf32>, vector<32x32xf32>, vector<2x32xf32> -> vector<2x32xf32>
    %59 = arith.addf %57, %58 : vector<2x32xf32>
    %60 = math.tanh %59 : vector<2x32xf32>
    %c8 = arith.constant 8 : index
    %c0_38 = arith.constant 0 : index
    %61 = vector.load %arg8[%c8, %c0_38] : memref<16x32xf32, #tpu.memory_space<vmem>>, vector<2x32xf32>
    tpu.vector_store %arg8[%c8, %c0_38], %60 {strides = array<i32>} : memref<16x32xf32, #tpu.memory_space<vmem>>, vector<2x32xf32>,
    %62 = vector.extract_strided_slice %8 {offsets = [12, 0], sizes = [2, 32], strides = [1, 1]} : vector<16x32xf32> to vector<2x32xf32>
    %cst_39 = arith.constant dense<0.000000e+00> : vector<2x32xf32>
    %63 = tpu.matmul %56, %1, %cst_39 {dimension_numbers = #tpu.dot_dimension_numbers<[1], [0], [0], [1], [0, 0, 1, 1], [], []>} : vector<2x32xf32>, vector<32x32xf32>, vector<2x32xf32> -> vector<2x32xf32>
    %64 = arith.addf %62, %63 : vector<2x32xf32>
    %65 = math.tanh %64 : vector<2x32xf32>
    %cst_40 = arith.constant dense<0.000000e+00> : vector<2x32xf32>
    %66 = tpu.matmul %56, %5, %cst_40 {dimension_numbers = #tpu.dot_dimension_numbers<[1], [0], [0], [1], [0, 0, 1, 1], [], []>} : vector<2x32xf32>, vector<32x32xf32>, vector<2x32xf32> -> vector<2x32xf32>
    %cst_41 = arith.constant dense<0.000000e+00> : vector<2x32xf32>
    %67 = tpu.matmul %60, %3, %cst_41 {dimension_numbers = #tpu.dot_dimension_numbers<[1], [0], [0], [1], [0, 0, 1, 1], [], []>} : vector<2x32xf32>, vector<32x32xf32>, vector<2x32xf32> -> vector<2x32xf32>
    %68 = arith.addf %66, %67 : vector<2x32xf32>
    %69 = math.tanh %68 : vector<2x32xf32>
    %c10 = arith.constant 10 : index
    %c0_42 = arith.constant 0 : index
    %70 = vector.load %arg8[%c10, %c0_42] : memref<16x32xf32, #tpu.memory_space<vmem>>, vector<2x32xf32>
    tpu.vector_store %arg8[%c10, %c0_42], %69 {strides = array<i32>} : memref<16x32xf32, #tpu.memory_space<vmem>>, vector<2x32xf32>,
    %71 = vector.extract_strided_slice %8 {offsets = [14, 0], sizes = [2, 32], strides = [1, 1]} : vector<16x32xf32> to vector<2x32xf32>
    %cst_43 = arith.constant dense<0.000000e+00> : vector<2x32xf32>
    %72 = tpu.matmul %65, %1, %cst_43 {dimension_numbers = #tpu.dot_dimension_numbers<[1], [0], [0], [1], [0, 0, 1, 1], [], []>} : vector<2x32xf32>, vector<32x32xf32>, vector<2x32xf32> -> vector<2x32xf32>
    %73 = arith.addf %71, %72 : vector<2x32xf32>
    %74 = math.tanh %73 : vector<2x32xf32>
    %cst_44 = arith.constant dense<0.000000e+00> : vector<2x32xf32>
    %75 = tpu.matmul %65, %5, %cst_44 {dimension_numbers = #tpu.dot_dimension_numbers<[1], [0], [0], [1], [0, 0, 1, 1], [], []>} : vector<2x32xf32>, vector<32x32xf32>, vector<2x32xf32> -> vector<2x32xf32>
    %cst_45 = arith.constant dense<0.000000e+00> : vector<2x32xf32>
    %76 = tpu.matmul %69, %3, %cst_45 {dimension_numbers = #tpu.dot_dimension_numbers<[1], [0], [0], [1], [0, 0, 1, 1], [], []>} : vector<2x32xf32>, vector<32x32xf32>, vector<2x32xf32> -> vector<2x32xf32>
    %77 = arith.addf %75, %76 : vector<2x32xf32>
    %78 = math.tanh %77 : vector<2x32xf32>
    %c12 = arith.constant 12 : index
    %c0_46 = arith.constant 0 : index
    %79 = vector.load %arg8[%c12, %c0_46] : memref<16x32xf32, #tpu.memory_space<vmem>>, vector<2x32xf32>
    tpu.vector_store %arg8[%c12, %c0_46], %78 {strides = array<i32>} : memref<16x32xf32, #tpu.memory_space<vmem>>, vector<2x32xf32>,
    %cst_47 = arith.constant dense<0.000000e+00> : vector<2x32xf32>
    %80 = tpu.matmul %74, %5, %cst_47 {dimension_numbers = #tpu.dot_dimension_numbers<[1], [0], [0], [1], [0, 0, 1, 1], [], []>} : vector<2x32xf32>, vector<32x32xf32>, vector<2x32xf32> -> vector<2x32xf32>
    %cst_48 = arith.constant dense<0.000000e+00> : vector<2x32xf32>
    %81 = tpu.matmul %78, %3, %cst_48 {dimension_numbers = #tpu.dot_dimension_numbers<[1], [0], [0], [1], [0, 0, 1, 1], [], []>} : vector<2x32xf32>, vector<32x32xf32>, vector<2x32xf32> -> vector<2x32xf32>
    %82 = arith.addf %80, %81 : vector<2x32xf32>
    %83 = math.tanh %82 : vector<2x32xf32>
    %c14 = arith.constant 14 : index
    %c0_49 = arith.constant 0 : index
    %84 = vector.load %arg8[%c14, %c0_49] : memref<16x32xf32, #tpu.memory_space<vmem>>, vector<2x32xf32>
    tpu.vector_store %arg8[%c14, %c0_49], %83 {strides = array<i32>} : memref<16x32xf32, #tpu.memory_space<vmem>>, vector<2x32xf32>,
    %c0_50 = arith.constant 0 : index
    %c0_51 = arith.constant 0 : index
    %c0_52 = arith.constant 0 : index
    %85 = vector.load %arg7[%c0_50, %c0_51, %c0_52] : memref<2x2x32xf32, #tpu.memory_space<vmem>>, vector<1x2x32xf32>
    %86 = vector.shape_cast %85 : vector<1x2x32xf32> to vector<2x32xf32>
    %87 = vector.shape_cast %74 : vector<2x32xf32> to vector<1x2x32xf32>
    tpu.vector_store %arg7[%c0_50, %c0_51, %c0_52], %87 {strides = array<i32>} : memref<2x2x32xf32, #tpu.memory_space<vmem>>, vector<1x2x32xf32>,
    %c1_53 = arith.constant 1 : index
    %c0_54 = arith.constant 0 : index
    %c0_55 = arith.constant 0 : index
    %88 = vector.load %arg7[%c1_53, %c0_54, %c0_55] : memref<2x2x32xf32, #tpu.memory_space<vmem>>, vector<1x2x32xf32>
    %89 = vector.shape_cast %88 : vector<1x2x32xf32> to vector<2x32xf32>
    %90 = vector.shape_cast %83 : vector<2x32xf32> to vector<1x2x32xf32>
    tpu.vector_store %arg7[%c1_53, %c0_54, %c0_55], %90 {strides = array<i32>} : memref<2x2x32xf32, #tpu.memory_space<vmem>>, vector<1x2x32xf32>,
    %c0_56 = arith.constant 0 : index
    %c0_57 = arith.constant 0 : index
    %91 = vector.load %arg8[%c0_56, %c0_57] : memref<16x32xf32, #tpu.memory_space<vmem>>, vector<16x32xf32>
    %c0_58 = arith.constant 0 : index
    %c0_59 = arith.constant 0 : index
    %92 = vector.load %arg5[%c0_58, %c0_59] : memref<32x32xf32, #tpu.memory_space<vmem>>, vector<32x32xf32>
    %cst_60 = arith.constant dense<0.000000e+00> : vector<16x32xf32>
    %93 = tpu.matmul %91, %92, %cst_60 {dimension_numbers = #tpu.dot_dimension_numbers<[1], [0], [0], [1], [0, 0, 1, 1], [], []>} : vector<16x32xf32>, vector<32x32xf32>, vector<16x32xf32> -> vector<16x32xf32>
    %cst_61 = arith.constant dense<0xFF800000> : vector<16xf32>
    %94 = vector.multi_reduction <maximumf>, %93, %cst_61 [1] : vector<16x32xf32> to vector<16xf32>
    %95 = vector.shape_cast %94 : vector<16xf32> to vector<16x1xf32>
    %96 = vector.broadcast %95 : vector<16x1xf32> to vector<16x32xf32>
    %97 = arith.subf %93, %96 : vector<16x32xf32>
    %98 = math.exp %97 : vector<16x32xf32>
    %cst_62 = arith.constant dense<0.000000e+00> : vector<16xf32>
    %99 = vector.multi_reduction <add>, %98, %cst_62 [1] : vector<16x32xf32> to vector<16xf32>
    %100 = vector.shape_cast %99 : vector<16xf32> to vector<16x1xf32>
    %101 = tpu.reciprocal %100 {approx = true} : vector<16x1xf32> -> vector<16x1xf32>
    %102 = arith.mulf %100, %101 : vector<16x1xf32>
    %cst_63 = arith.constant 2.000000e+00 : f32
    %103 = vector.broadcast %cst_63 : f32 to vector<16x1xf32>
    %104 = arith.subf %103, %102 : vector<16x1xf32>
    %105 = arith.mulf %101, %104 : vector<16x1xf32>
    %106 = vector.broadcast %105 : vector<16x1xf32> to vector<16x32xf32>
    %107 = arith.mulf %98, %106 : vector<16x32xf32>
    %c0_64 = arith.constant 0 : index
    %c0_65 = arith.constant 0 : index
    %108 = vector.load %arg6[%c0_64, %c0_65] : memref<16x32xf32, #tpu.memory_space<vmem>>, vector<16x32xf32>
    tpu.vector_store %arg6[%c0_64, %c0_65], %107 {strides = array<i32>} : memref<16x32xf32, #tpu.memory_space<vmem>>, vector<16x32xf32>,
    return
  }
}

</mosaic_0001>

<llo_original>
// kernel: rnnlm_forward.1
$region0: #{rnnlm_forward.1}
  #allocation0 [shape = 'u32[]', space=smem, size = 0x4, offset = 0x4, fixed_abs, tag = 'smem constant byte address 0x4 - core index']
  #allocation1 [shape = 'u32[144,128]{1,0:T(1,128)}', space=vmem, size = 0x12000, scoped, tag = 'internal scratch']
  #allocation2 [shape = 'f32[16,32]{1,0:T(8,128)}', space=vmem, size = 0x2000, scoped, tag = 'scratch operand']
  %s0 = inlined_call_operand.vmem [shape: f32[16,32], index: 0, kind: input, shape index: {}]
  %s1 = inlined_call_operand.vmem [shape: f32[2,2,32], index: 1, kind: input, shape index: {}]
  %s2 = inlined_call_operand.vmem [shape: f32[32,32], index: 2, kind: input, shape index: {}]
  %s3 = inlined_call_operand.vmem [shape: f32[1,32,32], index: 3, kind: input, shape index: {}]
  %s4 = inlined_call_operand.vmem [shape: f32[2,32,32], index: 4, kind: input, shape index: {}]
  %s5 = inlined_call_operand.vmem [shape: f32[32,32], index: 5, kind: input, shape index: {}]
  %s6 = inlined_call_operand.vmem [shape: f32[16,32], index: 6, kind: output, shape index: {0}]
  %s7 = inlined_call_operand.hbm [shape: f32[2,2,32], index: 7, kind: output, shape index: {1}]
  %8 = xla_tuple %s6, %s7
  %s9 = sld [smem:[#allocation0]]
  $region42: #{rnnlm_forward.1} parent=0
    _
  %s11 = ssub.s32 1, %s9
  %s12 = scalar_select 0, %s11, %s9
  $region1: #{rnnlm_forward.1} parent=0
    #allocation3 [shape = 'u8[2048]{0}', space=vmem, size = 0x800, scoped, tag = 'output window, operand 1, single buffered']
    #allocation4 [shape = 's32[1]{0}', space=sflag, size = 0x4, scoped, tag = 'scoped memory for rnnlm_forward.1']
    %13 = vsyncpa [#allocation4], 0
    // Predicated region
    $region2: #{rnnlm_forward.1} parent=1 // pred_check
      _
    $region3: #{rnnlm_forward.1} parent=1 // pred_check_branch
      %15 = sbr.rel (0) target = $region5
    $region4: #{rnnlm_forward.1} parent=1 // pred_region
      _
    $region5: #{rnnlm_forward.1} parent=1 // pred_fallthru
      _
    // Predicated region
    $region6: #{rnnlm_forward.1} parent=1 // pred_check
      _
    $region7: #{rnnlm_forward.1} parent=1 // pred_check_branch
      %17 = sbr.rel (0) target = $region9
    $region8: #{rnnlm_forward.1} parent=1 // pred_region
      _
    $region9: #{rnnlm_forward.1} parent=1 // pred_fallthru
      _
    // Predicated region
    $region10: #{rnnlm_forward.1} parent=1 // pred_check
      _
    $region11: #{rnnlm_forward.1} parent=1 // pred_check_branch
      %19 = sbr.rel (0) target = $region13
    $region12: #{rnnlm_forward.1} parent=1 // pred_region
      _
    $region13: #{rnnlm_forward.1} parent=1 // pred_fallthru
      _
    // Predicated region
    $region14: #{rnnlm_forward.1} parent=1 // pred_check
      _
    $region15: #{rnnlm_forward.1} parent=1 // pred_check_branch
      %21 = sbr.rel (0) target = $region17
    $region16: #{rnnlm_forward.1} parent=1 // pred_region
      _
    $region17: #{rnnlm_forward.1} parent=1 // pred_fallthru
      _
    // Predicated region
    $region18: #{rnnlm_forward.1} parent=1 // pred_check
      _
    $region19: #{rnnlm_forward.1} parent=1 // pred_check_branch
      %23 = sbr.rel (0) target = $region21
    $region20: #{rnnlm_forward.1} parent=1 // pred_region
      _
    $region21: #{rnnlm_forward.1} parent=1 // pred_fallthru
      _
    // Predicated region
    $region22: #{rnnlm_forward.1} parent=1 // pred_check
      _
    $region23: #{rnnlm_forward.1} parent=1 // pred_check_branch
      %25 = sbr.rel (0) target = $region25
    $region24: #{rnnlm_forward.1} parent=1 // pred_region
      _
    $region25: #{rnnlm_forward.1} parent=1 // pred_fallthru
      _
    %v26 = vld [vmem:[%s4] sm:$0xff]
    %v27 = vld [vmem:[%s4 + $0x8] sm:$0xff]
    %v28 = vld [vmem:[%s4 + $0x10] sm:$0xff]
    %v29 = vld [vmem:[%s4 + $0x18] sm:$0xff]
    %s30 = scalar_lea.vmem %s4, 32
    %v31 = vld [vmem:[%s30] sm:$0xff]
    %v32 = vld [vmem:[%s30 + $0x8] sm:$0xff]
    %v33 = vld [vmem:[%s30 + $0x10] sm:$0xff]
    %v34 = vld [vmem:[%s30 + $0x18] sm:$0xff]
    %v35 = vld [vmem:[%s3] sm:$0xff]
    %v36 = vld [vmem:[%s3 + $0x8] sm:$0xff]
    %v37 = vld [vmem:[%s3 + $0x10] sm:$0xff]
    %v38 = vld [vmem:[%s3 + $0x18] sm:$0xff]
    %v39 = vld [vmem:[%s0] sm:$0xff]
    %v40 = vld [vmem:[%s0 + $0x8] sm:$0xff]
    %v41 = vld [vmem:[%s2] sm:$0xff]
    %v42 = vld [vmem:[%s2 + $0x8] sm:$0xff]
    %v43 = vld [vmem:[%s2 + $0x10] sm:$0xff]
    %v44 = vld [vmem:[%s2 + $0x18] sm:$0xff]
    %vm45 = vcmask 261120
    %v47 = vsel %vm45, %v39, 0
    %v50 = vsel %vm45, %v40, 0
    %52 = vmatprep.subr.mxu0 0.0
    %53 = vmatpush1.msra.mxu0 %v41
    %54 = vmatprep.subr.mxu0 0.0
    %55 = vmatpush1.msra.mxu0 %v42
    %56 = vmatprep.subr.mxu0 0.0
    %57 = vmatpush1.msra.mxu0 %v43
    %58 = vmatprep.subr.mxu0 0.0
    %59 = vmatpush1.msra.mxu0 %v44
    %60 = vmatprep.subr.mxu0 0.0
    %61 = vmatpush1.msra.mxu0 0.0
    %62 = vmatprep.subr.mxu0 0.0
    %63 = vmatpush1.msra.mxu0 0.0
    %64 = vmatprep.subr.mxu0 0.0
    %65 = vmatpush1.msra.mxu0 0.0
    %66 = vmatprep.subr.mxu0 0.0
    %67 = vmatpush1.msra.mxu0 0.0
    %68 = vmatprep.subr.mxu0 0.0
    %69 = vmatpush1.msra.mxu0 0.0
    %70 = vmatprep.subr.mxu0 0.0
    %71 = vmatpush1.msra.mxu0 0.0
    %72 = vmatprep.subr.mxu0 0.0
    %73 = vmatpush1.msra.mxu0 0.0
    %74 = vmatprep.subr.mxu0 0.0
    %75 = vmatpush1.msra.mxu0 0.0
    %76 = vmatprep.subr.mxu0 0.0
    %77 = vmatpush1.msra.mxu0 0.0
    %78 = vmatprep.subr.mxu0 0.0
    %79 = vmatpush1.msra.mxu0 0.0
    %80 = vmatprep.subr.mxu0 0.0
    %81 = vmatpush1.msra.mxu0 0.0
    %82 = vmatprep.subr.mxu0 0.0
    %83 = vmatpush1.msra.mxu0 0.0
    %84 = vmatprep.subr.mxu0 0.0
    %85 = vmatpush1.msra.mxu0 0.0
    %86 = vmatprep.subr.mxu0 0.0
    %87 = vmatpush1.msra.mxu0 0.0
    %88 = vmatprep.subr.mxu0 0.0
    %89 = vmatpush1.msra.mxu0 0.0
    %90 = vmatprep.subr.mxu0 0.0
    %91 = vmatpush1.msra.mxu0 0.0
    %92 = vmatprep.subr.mxu0 0.0
    %93 = vmatpush1.msra.mxu0 0.0
    %94 = vmatprep.subr.mxu0 0.0
    %95 = vmatpush1.msra.mxu0 0.0
    %96 = vmatprep.subr.mxu0 0.0
    %97 = vmatpush1.msra.mxu0 0.0
    %98 = vmatprep.subr.mxu0 0.0
    %99 = vmatpush1.msra.mxu0 0.0
    %100 = vmatprep.subr.mxu0 0.0
    %101 = vmatpush1.msra.mxu0 0.0
    %102 = vmatprep.subr.mxu0 0.0
    %103 = vmatpush1.msra.mxu0 0.0
    %104 = vmatprep.subr.mxu0 0.0
    %105 = vmatpush1.msra.mxu0 0.0
    %106 = vmatprep.subr.mxu0 0.0
    %107 = vmatpush1.msra.mxu0 0.0
    %108 = vmatprep.subr.mxu0 0.0
    %109 = vmatpush1.msra.mxu0 0.0
    %110 = vmatprep.subr.mxu0 0.0
    %111 = vmatpush1.msra.mxu0 0.0
    %112 = vmatprep.subr.mxu0 0.0
    %113 = vmatpush1.msra.mxu0 0.0
    %114 = vmatprep.subr.mxu0 0.0
    %115 = vmatpush1.msra.mxu0 0.0
    %116 = vmatprep.mubr.f32.mxu0 0.0
    %117 = vmatmul.mubr.f32.gmra.mrb[0].mxu0 %v47
    %v118 = vpop.f32.mrb[0].mxu0
    %v119 = vadd.f32 0.0, %v118
    %v120 = vpop.f32.mrb[0].mxu0
    %121 = vmatprep.mubr.f32.mxu0 0.0
    %122 = vmatmul.mubr.f32.gmra.mrb[0].mxu0 %v50
    %v123 = vpop.f32.mrb[0].mxu0
    %v124 = vadd.f32 0.0, %v123
    %v125 = vpop.f32.mrb[0].mxu0
    %126 = vdwg.mxu0
    %v127 = vld [vmem:[%s1] sm:$0x3]
    %s128 = scalar_lea.vmem %s1, 2
    %v129 = vld [vmem:[%s128] sm:$0x3]
    %v131 = vsel %vm45, %v127, 0
    %133 = vmatprep.subr.mxu0 0.0
    %134 = vmatpush1.msra.mxu0 %v26
    %135 = vmatprep.subr.mxu0 0.0
    %136 = vmatpush1.msra.mxu0 %v27
    %137 = vmatprep.subr.mxu0 0.0
    %138 = vmatpush1.msra.mxu0 %v28
    %139 = vmatprep.subr.mxu0 0.0
    %140 = vmatpush1.msra.mxu0 %v29
    %141 = vmatprep.subr.mxu0 0.0
    %142 = vmatpush1.msra.mxu0 0.0
    %143 = vmatprep.subr.mxu0 0.0
    %144 = vmatpush1.msra.mxu0 0.0
    %145 = vmatprep.subr.mxu0 0.0
    %146 = vmatpush1.msra.mxu0 0.0
    %147 = vmatprep.subr.mxu0 0.0
    %148 = vmatpush1.msra.mxu0 0.0
    %149 = vmatprep.subr.mxu0 0.0
    %150 = vmatpush1.msra.mxu0 0.0
    %151 = vmatprep.subr.mxu0 0.0
    %152 = vmatpush1.msra.mxu0 0.0
    %153 = vmatprep.subr.mxu0 0.0
    %154 = vmatpush1.msra.mxu0 0.0
    %155 = vmatprep.subr.mxu0 0.0
    %156 = vmatpush1.msra.mxu0 0.0
    %157 = vmatprep.subr.mxu0 0.0
    %158 = vmatpush1.msra.mxu0 0.0
    %159 = vmatprep.subr.mxu0 0.0
    %160 = vmatpush1.msra.mxu0 0.0
    %161 = vmatprep.subr.mxu0 0.0
    %162 = vmatpush1.msra.mxu0 0.0
    %163 = vmatprep.subr.mxu0 0.0
    %164 = vmatpush1.msra.mxu0 0.0
    %165 = vmatprep.subr.mxu0 0.0
    %166 = vmatpush1.msra.mxu0 0.0
    %167 = vmatprep.subr.mxu0 0.0
    %168 = vmatpush1.msra.mxu0 0.0
    %169 = vmatprep.subr.mxu0 0.0
    %170 = vmatpush1.msra.mxu0 0.0
    %171 = vmatprep.subr.mxu0 0.0
    %172 = vmatpush1.msra.mxu0 0.0
    %173 = vmatprep.subr.mxu0 0.0
    %174 = vmatpush1.msra.mxu0 0.0
    %175 = vmatprep.subr.mxu0 0.0
    %176 = vmatpush1.msra.mxu0 0.0
    %177 = vmatprep.subr.mxu0 0.0
    %178 = vmatpush1.msra.mxu0 0.0
    %179 = vmatprep.subr.mxu0 0.0
    %180 = vmatpush1.msra.mxu0 0.0
    %181 = vmatprep.subr.mxu0 0.0
    %182 = vmatpush1.msra.mxu0 0.0
    %183 = vmatprep.subr.mxu0 0.0
    %184 = vmatpush1.msra.mxu0 0.0
    %185 = vmatprep.subr.mxu0 0.0
    %186 = vmatpush1.msra.mxu0 0.0
    %187 = vmatprep.subr.mxu0 0.0
    %188 = vmatpush1.msra.mxu0 0.0
    %189 = vmatprep.subr.mxu0 0.0
    %190 = vmatpush1.msra.mxu0 0.0
    %191 = vmatprep.subr.mxu0 0.0
    %192 = vmatpush1.msra.mxu0 0.0
    %193 = vmatprep.subr.mxu0 0.0
    %194 = vmatpush1.msra.mxu0 0.0
    %195 = vmatprep.subr.mxu0 0.0
    %196 = vmatpush1.msra.mxu0 0.0
    %197 = vmatprep.mubr.f32.mxu0 0.0
    %198 = vmatmul.mubr.f32.gmra.mrb[0].mxu0 %v131
    %v199 = vpop.f32.mrb[0].mxu0
    %v200 = vadd.f32 0.0, %v199
    %v201 = vpop.f32.mrb[0].mxu0
    %202 = vdwg.mxu0
    %v203 = vadd.f32 %v119, %v200
    %v204 = vtanh.pop %v203
    %v206 = vsel %vm45, %v204, 0
    %208 = vmatprep.subr.mxu0 0.0
    %209 = vmatpush1.msra.mxu0 %v26
    %210 = vmatprep.subr.mxu0 0.0
    %211 = vmatpush1.msra.mxu0 %v27
    %212 = vmatprep.subr.mxu0 0.0
    %213 = vmatpush1.msra.mxu0 %v28
    %214 = vmatprep.subr.mxu0 0.0
    %215 = vmatpush1.msra.mxu0 %v29
    %216 = vmatprep.subr.mxu0 0.0
    %217 = vmatpush1.msra.mxu0 0.0
    %218 = vmatprep.subr.mxu0 0.0
    %219 = vmatpush1.msra.mxu0 0.0
    %220 = vmatprep.subr.mxu0 0.0
    %221 = vmatpush1.msra.mxu0 0.0
    %222 = vmatprep.subr.mxu0 0.0
    %223 = vmatpush1.msra.mxu0 0.0
    %224 = vmatprep.subr.mxu0 0.0
    %225 = vmatpush1.msra.mxu0 0.0
    %226 = vmatprep.subr.mxu0 0.0
    %227 = vmatpush1.msra.mxu0 0.0
    %228 = vmatprep.subr.mxu0 0.0
    %229 = vmatpush1.msra.mxu0 0.0
    %230 = vmatprep.subr.mxu0 0.0
    %231 = vmatpush1.msra.mxu0 0.0
    %232 = vmatprep.subr.mxu0 0.0
    %233 = vmatpush1.msra.mxu0 0.0
    %234 = vmatprep.subr.mxu0 0.0
    %235 = vmatpush1.msra.mxu0 0.0
    %236 = vmatprep.subr.mxu0 0.0
    %237 = vmatpush1.msra.mxu0 0.0
    %238 = vmatprep.subr.mxu0 0.0
    %239 = vmatpush1.msra.mxu0 0.0
    %240 = vmatprep.subr.mxu0 0.0
    %241 = vmatpush1.msra.mxu0 0.0
    %242 = vmatprep.subr.mxu0 0.0
    %243 = vmatpush1.msra.mxu0 0.0
    %244 = vmatprep.subr.mxu0 0.0
    %245 = vmatpush1.msra.mxu0 0.0
    %246 = vmatprep.subr.mxu0 0.0
    %247 = vmatpush1.msra.mxu0 0.0
    %248 = vmatprep.subr.mxu0 0.0
    %249 = vmatpush1.msra.mxu0 0.0
    %250 = vmatprep.subr.mxu0 0.0
    %251 = vmatpush1.msra.mxu0 0.0
    %252 = vmatprep.subr.mxu0 0.0
    %253 = vmatpush1.msra.mxu0 0.0
    %254 = vmatprep.subr.mxu0 0.0
    %255 = vmatpush1.msra.mxu0 0.0
    %256 = vmatprep.subr.mxu0 0.0
    %257 = vmatpush1.msra.mxu0 0.0
    %258 = vmatprep.subr.mxu0 0.0
    %259 = vmatpush1.msra.mxu0 0.0
    %260 = vmatprep.subr.mxu0 0.0
    %261 = vmatpush1.msra.mxu0 0.0
    %262 = vmatprep.subr.mxu0 0.0
    %263 = vmatpush1.msra.mxu0 0.0
    %264 = vmatprep.subr.mxu0 0.0
    %265 = vmatpush1.msra.mxu0 0.0
    %266 = vmatprep.subr.mxu0 0.0
    %267 = vmatpush1.msra.mxu0 0.0
    %268 = vmatprep.subr.mxu0 0.0
    %269 = vmatpush1.msra.mxu0 0.0
    %270 = vmatprep.subr.mxu0 0.0
    %271 = vmatpush1.msra.mxu0 0.0
    %272 = vmatprep.mubr.f32.mxu0 0.0
    %273 = vmatmul.mubr.f32.gmra.mrb[0].mxu0 %v206
    %v274 = vpop.f32.mrb[0].mxu0
    %v275 = vadd.f32 0.0, %v274
    %v276 = vpop.f32.mrb[0].mxu0
    %277 = vdwg.mxu0
    %v279 = vrot.slane %v275, 6
    %v281 = vadd.f32 %v119, %v279
    %v282 = vtanh.pop %v281
    %v284 = vsel %vm45, %v129, 0
    %286 = vmatprep.subr.mxu0 0.0
    %287 = vmatpush1.msra.mxu0 %v31
    %288 = vmatprep.subr.mxu0 0.0
    %289 = vmatpush1.msra.mxu0 %v32
    %290 = vmatprep.subr.mxu0 0.0
    %291 = vmatpush1.msra.mxu0 %v33
    %292 = vmatprep.subr.mxu0 0.0
    %293 = vmatpush1.msra.mxu0 %v34
    %294 = vmatprep.subr.mxu0 0.0
    %295 = vmatpush1.msra.mxu0 0.0
    %296 = vmatprep.subr.mxu0 0.0
    %297 = vmatpush1.msra.mxu0 0.0
    %298 = vmatprep.subr.mxu0 0.0
    %299 = vmatpush1.msra.mxu0 0.0
    %300 = vmatprep.subr.mxu0 0.0
    %301 = vmatpush1.msra.mxu0 0.0
    %302 = vmatprep.subr.mxu0 0.0
    %303 = vmatpush1.msra.mxu0 0.0
    %304 = vmatprep.subr.mxu0 0.0
    %305 = vmatpush1.msra.mxu0 0.0
    %306 = vmatprep.subr.mxu0 0.0
    %307 = vmatpush1.msra.mxu0 0.0
    %308 = vmatprep.subr.mxu0 0.0
    %309 = vmatpush1.msra.mxu0 0.0
    %310 = vmatprep.subr.mxu0 0.0
    %311 = vmatpush1.msra.mxu0 0.0
    %312 = vmatprep.subr.mxu0 0.0
    %313 = vmatpush1.msra.mxu0 0.0
    %314 = vmatprep.subr.mxu0 0.0
    %315 = vmatpush1.msra.mxu0 0.0
    %316 = vmatprep.subr.mxu0 0.0
    %317 = vmatpush1.msra.mxu0 0.0
    %318 = vmatprep.subr.mxu0 0.0
    %319 = vmatpush1.msra.mxu0 0.0
    %320 = vmatprep.subr.mxu0 0.0
    %321 = vmatpush1.msra.mxu0 0.0
    %322 = vmatprep.subr.mxu0 0.0
    %323 = vmatpush1.msra.mxu0 0.0
    %324 = vmatprep.subr.mxu0 0.0
    %325 = vmatpush1.msra.mxu0 0.0
    %326 = vmatprep.subr.mxu0 0.0
    %327 = vmatpush1.msra.mxu0 0.0
    %328 = vmatprep.subr.mxu0 0.0
    %329 = vmatpush1.msra.mxu0 0.0
    %330 = vmatprep.subr.mxu0 0.0
    %331 = vmatpush1.msra.mxu0 0.0
    %332 = vmatprep.subr.mxu0 0.0
    %333 = vmatpush1.msra.mxu0 0.0
    %334 = vmatprep.subr.mxu0 0.0
    %335 = vmatpush1.msra.mxu0 0.0
    %336 = vmatprep.subr.mxu0 0.0
    %337 = vmatpush1.msra.mxu0 0.0
    %338 = vmatprep.subr.mxu0 0.0
    %339 = vmatpush1.msra.mxu0 0.0
    %340 = vmatprep.subr.mxu0 0.0
    %341 = vmatpush1.msra.mxu0 0.0
    %342 = vmatprep.subr.mxu0 0.0
    %343 = vmatpush1.msra.mxu0 0.0
    %344 = vmatprep.subr.mxu0 0.0
    %345 = vmatpush1.msra.mxu0 0.0
    %346 = vmatprep.subr.mxu0 0.0
    %347 = vmatpush1.msra.mxu0 0.0
    %348 = vmatprep.subr.mxu0 0.0
    %349 = vmatpush1.msra.mxu0 0.0
    %350 = vmatprep.mubr.f32.mxu0 0.0
    %351 = vmatmul.mubr.f32.gmra.mrb[0].mxu0 %v284
    %v352 = vpop.f32.mrb[0].mxu0
    %v353 = vadd.f32 0.0, %v352
    %v354 = vpop.f32.mrb[0].mxu0
    %355 = vdwg.mxu0
    %356 = vmatprep.subr.mxu0 0.0
    %357 = vmatpush1.msra.mxu0 %v35
    %358 = vmatprep.subr.mxu0 0.0
    %359 = vmatpush1.msra.mxu0 %v36
    %360 = vmatprep.subr.mxu0 0.0
    %361 = vmatpush1.msra.mxu0 %v37
    %362 = vmatprep.subr.mxu0 0.0
    %363 = vmatpush1.msra.mxu0 %v38
    %364 = vmatprep.subr.mxu0 0.0
    %365 = vmatpush1.msra.mxu0 0.0
    %366 = vmatprep.subr.mxu0 0.0
    %367 = vmatpush1.msra.mxu0 0.0
    %368 = vmatprep.subr.mxu0 0.0
    %369 = vmatpush1.msra.mxu0 0.0
    %370 = vmatprep.subr.mxu0 0.0
    %371 = vmatpush1.msra.mxu0 0.0
    %372 = vmatprep.subr.mxu0 0.0
    %373 = vmatpush1.msra.mxu0 0.0
    %374 = vmatprep.subr.mxu0 0.0
    %375 = vmatpush1.msra.mxu0 0.0
    %376 = vmatprep.subr.mxu0 0.0
    %377 = vmatpush1.msra.mxu0 0.0
    %378 = vmatprep.subr.mxu0 0.0
    %379 = vmatpush1.msra.mxu0 0.0
    %380 = vmatprep.subr.mxu0 0.0
    %381 = vmatpush1.msra.mxu0 0.0
    %382 = vmatprep.subr.mxu0 0.0
    %383 = vmatpush1.msra.mxu0 0.0
    %384 = vmatprep.subr.mxu0 0.0
    %385 = vmatpush1.msra.mxu0 0.0
    %386 = vmatprep.subr.mxu0 0.0
    %387 = vmatpush1.msra.mxu0 0.0
    %388 = vmatprep.subr.mxu0 0.0
    %389 = vmatpush1.msra.mxu0 0.0
    %390 = vmatprep.subr.mxu0 0.0
    %391 = vmatpush1.msra.mxu0 0.0
    %392 = vmatprep.subr.mxu0 0.0
    %393 = vmatpush1.msra.mxu0 0.0
    %394 = vmatprep.subr.mxu0 0.0
    %395 = vmatpush1.msra.mxu0 0.0
    %396 = vmatprep.subr.mxu0 0.0
    %397 = vmatpush1.msra.mxu0 0.0
    %398 = vmatprep.subr.mxu0 0.0
    %399 = vmatpush1.msra.mxu0 0.0
    %400 = vmatprep.subr.mxu0 0.0
    %401 = vmatpush1.msra.mxu0 0.0
    %402 = vmatprep.subr.mxu0 0.0
    %403 = vmatpush1.msra.mxu0 0.0
    %404 = vmatprep.subr.mxu0 0.0
    %405 = vmatpush1.msra.mxu0 0.0
    %406 = vmatprep.subr.mxu0 0.0
    %407 = vmatpush1.msra.mxu0 0.0
    %408 = vmatprep.subr.mxu0 0.0
    %409 = vmatpush1.msra.mxu0 0.0
    %410 = vmatprep.subr.mxu0 0.0
    %411 = vmatpush1.msra.mxu0 0.0
    %412 = vmatprep.subr.mxu0 0.0
    %413 = vmatpush1.msra.mxu0 0.0
    %414 = vmatprep.subr.mxu0 0.0
    %415 = vmatpush1.msra.mxu0 0.0
    %416 = vmatprep.subr.mxu0 0.0
    %417 = vmatpush1.msra.mxu0 0.0
    %418 = vmatprep.subr.mxu0 0.0
    %419 = vmatpush1.msra.mxu0 0.0
    %420 = vmatprep.mubr.f32.mxu0 0.0
    %421 = vmatmul.mubr.f32.gmra.mrb[0].mxu0 %v206
    %v422 = vpop.f32.mrb[0].mxu0
    %v423 = vadd.f32 %v353, %v422
    %v424 = vpop.f32.mrb[0].mxu0
    %425 = vdwg.mxu0
    %v426 = vtanh.pop %v423
    %vm427 = vcmask 254976
    %428 = vst.msk [vmem:[#allocation2] sm:$0x3] %vm427, %v426
    %v430 = vrot.slane %v282, 2
    %v431 = vsel %vm45, %v430, 0
    %433 = vmatprep.subr.mxu0 0.0
    %434 = vmatpush1.msra.mxu0 %v26
    %435 = vmatprep.subr.mxu0 0.0
    %436 = vmatpush1.msra.mxu0 %v27
    %437 = vmatprep.subr.mxu0 0.0
    %438 = vmatpush1.msra.mxu0 %v28
    %439 = vmatprep.subr.mxu0 0.0
    %440 = vmatpush1.msra.mxu0 %v29
    %441 = vmatprep.subr.mxu0 0.0
    %442 = vmatpush1.msra.mxu0 0.0
    %443 = vmatprep.subr.mxu0 0.0
    %444 = vmatpush1.msra.mxu0 0.0
    %445 = vmatprep.subr.mxu0 0.0
    %446 = vmatpush1.msra.mxu0 0.0
    %447 = vmatprep.subr.mxu0 0.0
    %448 = vmatpush1.msra.mxu0 0.0
    %449 = vmatprep.subr.mxu0 0.0
    %450 = vmatpush1.msra.mxu0 0.0
    %451 = vmatprep.subr.mxu0 0.0
    %452 = vmatpush1.msra.mxu0 0.0
    %453 = vmatprep.subr.mxu0 0.0
    %454 = vmatpush1.msra.mxu0 0.0
    %455 = vmatprep.subr.mxu0 0.0
    %456 = vmatpush1.msra.mxu0 0.0
    %457 = vmatprep.subr.mxu0 0.0
    %458 = vmatpush1.msra.mxu0 0.0
    %459 = vmatprep.subr.mxu0 0.0
    %460 = vmatpush1.msra.mxu0 0.0
    %461 = vmatprep.subr.mxu0 0.0
    %462 = vmatpush1.msra.mxu0 0.0
    %463 = vmatprep.subr.mxu0 0.0
    %464 = vmatpush1.msra.mxu0 0.0
    %465 = vmatprep.subr.mxu0 0.0
    %466 = vmatpush1.msra.mxu0 0.0
    %467 = vmatprep.subr.mxu0 0.0
    %468 = vmatpush1.msra.mxu0 0.0
    %469 = vmatprep.subr.mxu0 0.0
    %470 = vmatpush1.msra.mxu0 0.0
    %471 = vmatprep.subr.mxu0 0.0
    %472 = vmatpush1.msra.mxu0 0.0
    %473 = vmatprep.subr.mxu0 0.0
    %474 = vmatpush1.msra.mxu0 0.0
    %475 = vmatprep.subr.mxu0 0.0
    %476 = vmatpush1.msra.mxu0 0.0
    %477 = vmatprep.subr.mxu0 0.0
    %478 = vmatpush1.msra.mxu0 0.0
    %479 = vmatprep.subr.mxu0 0.0
    %480 = vmatpush1.msra.mxu0 0.0
    %481 = vmatprep.subr.mxu0 0.0
    %482 = vmatpush1.msra.mxu0 0.0
    %483 = vmatprep.subr.mxu0 0.0
    %484 = vmatpush1.msra.mxu0 0.0
    %485 = vmatprep.subr.mxu0 0.0
    %486 = vmatpush1.msra.mxu0 0.0
    %487 = vmatprep.subr.mxu0 0.0
    %488 = vmatpush1.msra.mxu0 0.0
    %489 = vmatprep.subr.mxu0 0.0
    %490 = vmatpush1.msra.mxu0 0.0
    %491 = vmatprep.subr.mxu0 0.0
    %492 = vmatpush1.msra.mxu0 0.0
    %493 = vmatprep.subr.mxu0 0.0
    %494 = vmatpush1.msra.mxu0 0.0
    %495 = vmatprep.subr.mxu0 0.0
    %496 = vmatpush1.msra.mxu0 0.0
    %497 = vmatprep.mubr.f32.mxu0 0.0
    %498 = vmatmul.mubr.f32.gmra.mrb[0].mxu0 %v431
    %v499 = vpop.f32.mrb[0].mxu0
    %v500 = vadd.f32 0.0, %v499
    %v501 = vpop.f32.mrb[0].mxu0
    %502 = vdwg.mxu0
    %v504 = vrot.slane %v500, 4
    %v506 = vadd.f32 %v119, %v504
    %v507 = vtanh.pop %v506
    %v509 = vsel %vm45, %v426, 0
    %511 = vmatprep.subr.mxu0 0.0
    %512 = vmatpush1.msra.mxu0 %v31
    %513 = vmatprep.subr.mxu0 0.0
    %514 = vmatpush1.msra.mxu0 %v32
    %515 = vmatprep.subr.mxu0 0.0
    %516 = vmatpush1.msra.mxu0 %v33
    %517 = vmatprep.subr.mxu0 0.0
    %518 = vmatpush1.msra.mxu0 %v34
    %519 = vmatprep.subr.mxu0 0.0
    %520 = vmatpush1.msra.mxu0 0.0
    %521 = vmatprep.subr.mxu0 0.0
    %522 = vmatpush1.msra.mxu0 0.0
    %523 = vmatprep.subr.mxu0 0.0
    %524 = vmatpush1.msra.mxu0 0.0
    %525 = vmatprep.subr.mxu0 0.0
    %526 = vmatpush1.msra.mxu0 0.0
    %527 = vmatprep.subr.mxu0 0.0
    %528 = vmatpush1.msra.mxu0 0.0
    %529 = vmatprep.subr.mxu0 0.0
    %530 = vmatpush1.msra.mxu0 0.0
    %531 = vmatprep.subr.mxu0 0.0
    %532 = vmatpush1.msra.mxu0 0.0
    %533 = vmatprep.subr.mxu0 0.0
    %534 = vmatpush1.msra.mxu0 0.0
    %535 = vmatprep.subr.mxu0 0.0
    %536 = vmatpush1.msra.mxu0 0.0
    %537 = vmatprep.subr.mxu0 0.0
    %538 = vmatpush1.msra.mxu0 0.0
    %539 = vmatprep.subr.mxu0 0.0
    %540 = vmatpush1.msra.mxu0 0.0
    %541 = vmatprep.subr.mxu0 0.0
    %542 = vmatpush1.msra.mxu0 0.0
    %543 = vmatprep.subr.mxu0 0.0
    %544 = vmatpush1.msra.mxu0 0.0
    %545 = vmatprep.subr.mxu0 0.0
    %546 = vmatpush1.msra.mxu0 0.0
    %547 = vmatprep.subr.mxu0 0.0
    %548 = vmatpush1.msra.mxu0 0.0
    %549 = vmatprep.subr.mxu0 0.0
    %550 = vmatpush1.msra.mxu0 0.0
    %551 = vmatprep.subr.mxu0 0.0
    %552 = vmatpush1.msra.mxu0 0.0
    %553 = vmatprep.subr.mxu0 0.0
    %554 = vmatpush1.msra.mxu0 0.0
    %555 = vmatprep.subr.mxu0 0.0
    %556 = vmatpush1.msra.mxu0 0.0
    %557 = vmatprep.subr.mxu0 0.0
    %558 = vmatpush1.msra.mxu0 0.0
    %559 = vmatprep.subr.mxu0 0.0
    %560 = vmatpush1.msra.mxu0 0.0
    %561 = vmatprep.subr.mxu0 0.0
    %562 = vmatpush1.msra.mxu0 0.0
    %563 = vmatprep.subr.mxu0 0.0
    %564 = vmatpush1.msra.mxu0 0.0
    %565 = vmatprep.subr.mxu0 0.0
    %566 = vmatpush1.msra.mxu0 0.0
    %567 = vmatprep.subr.mxu0 0.0
    %568 = vmatpush1.msra.mxu0 0.0
    %569 = vmatprep.subr.mxu0 0.0
    %570 = vmatpush1.msra.mxu0 0.0
    %571 = vmatprep.subr.mxu0 0.0
    %572 = vmatpush1.msra.mxu0 0.0
    %573 = vmatprep.subr.mxu0 0.0
    %574 = vmatpush1.msra.mxu0 0.0
    %575 = vmatprep.mubr.f32.mxu0 0.0
    %576 = vmatmul.mubr.f32.gmra.mrb[0].mxu0 %v509
    %v577 = vpop.f32.mrb[0].mxu0
    %v578 = vadd.f32 0.0, %v577
    %v579 = vpop.f32.mrb[0].mxu0
    %580 = vdwg.mxu0
    %581 = vmatprep.subr.mxu0 0.0
    %582 = vmatpush1.msra.mxu0 %v35
    %583 = vmatprep.subr.mxu0 0.0
    %584 = vmatpush1.msra.mxu0 %v36
    %585 = vmatprep.subr.mxu0 0.0
    %586 = vmatpush1.msra.mxu0 %v37
    %587 = vmatprep.subr.mxu0 0.0
    %588 = vmatpush1.msra.mxu0 %v38
    %589 = vmatprep.subr.mxu0 0.0
    %590 = vmatpush1.msra.mxu0 0.0
    %591 = vmatprep.subr.mxu0 0.0
    %592 = vmatpush1.msra.mxu0 0.0
    %593 = vmatprep.subr.mxu0 0.0
    %594 = vmatpush1.msra.mxu0 0.0
    %595 = vmatprep.subr.mxu0 0.0
    %596 = vmatpush1.msra.mxu0 0.0
    %597 = vmatprep.subr.mxu0 0.0
    %598 = vmatpush1.msra.mxu0 0.0
    %599 = vmatprep.subr.mxu0 0.0
    %600 = vmatpush1.msra.mxu0 0.0
    %601 = vmatprep.subr.mxu0 0.0
    %602 = vmatpush1.msra.mxu0 0.0
    %603 = vmatprep.subr.mxu0 0.0
    %604 = vmatpush1.msra.mxu0 0.0
    %605 = vmatprep.subr.mxu0 0.0
    %606 = vmatpush1.msra.mxu0 0.0
    %607 = vmatprep.subr.mxu0 0.0
    %608 = vmatpush1.msra.mxu0 0.0
    %609 = vmatprep.subr.mxu0 0.0
    %610 = vmatpush1.msra.mxu0 0.0
    %611 = vmatprep.subr.mxu0 0.0
    %612 = vmatpush1.msra.mxu0 0.0
    %613 = vmatprep.subr.mxu0 0.0
    %614 = vmatpush1.msra.mxu0 0.0
    %615 = vmatprep.subr.mxu0 0.0
    %616 = vmatpush1.msra.mxu0 0.0
    %617 = vmatprep.subr.mxu0 0.0
    %618 = vmatpush1.msra.mxu0 0.0
    %619 = vmatprep.subr.mxu0 0.0
    %620 = vmatpush1.msra.mxu0 0.0
    %621 = vmatprep.subr.mxu0 0.0
    %622 = vmatpush1.msra.mxu0 0.0
    %623 = vmatprep.subr.mxu0 0.0
    %624 = vmatpush1.msra.mxu0 0.0
    %625 = vmatprep.subr.mxu0 0.0
    %626 = vmatpush1.msra.mxu0 0.0
    %627 = vmatprep.subr.mxu0 0.0
    %628 = vmatpush1.msra.mxu0 0.0
    %629 = vmatprep.subr.mxu0 0.0
    %630 = vmatpush1.msra.mxu0 0.0
    %631 = vmatprep.subr.mxu0 0.0
    %632 = vmatpush1.msra.mxu0 0.0
    %633 = vmatprep.subr.mxu0 0.0
    %634 = vmatpush1.msra.mxu0 0.0
    %635 = vmatprep.subr.mxu0 0.0
    %636 = vmatpush1.msra.mxu0 0.0
    %637 = vmatprep.subr.mxu0 0.0
    %638 = vmatpush1.msra.mxu0 0.0
    %639 = vmatprep.subr.mxu0 0.0
    %640 = vmatpush1.msra.mxu0 0.0
    %641 = vmatprep.subr.mxu0 0.0
    %642 = vmatpush1.msra.mxu0 0.0
    %643 = vmatprep.subr.mxu0 0.0
    %644 = vmatpush1.msra.mxu0 0.0
    %645 = vmatprep.mubr.f32.mxu0 0.0
    %646 = vmatmul.mubr.f32.gmra.mrb[0].mxu0 %v431
    %v647 = vpop.f32.mrb[0].mxu0
    %v648 = vadd.f32 %v578, %v647
    %v649 = vpop.f32.mrb[0].mxu0
    %650 = vdwg.mxu0
    %v651 = vtanh.pop %v648
    %652 = vst.msk [vmem:[#allocation2 + $0x2] sm:$0x3] %vm427, %v651
    %v654 = vrot.slane %v507, 4
    %v655 = vsel %vm45, %v654, 0
    %657 = vmatprep.subr.mxu0 0.0
    %658 = vmatpush1.msra.mxu0 %v26
    %659 = vmatprep.subr.mxu0 0.0
    %660 = vmatpush1.msra.mxu0 %v27
    %661 = vmatprep.subr.mxu0 0.0
    %662 = vmatpush1.msra.mxu0 %v28
    %663 = vmatprep.subr.mxu0 0.0
    %664 = vmatpush1.msra.mxu0 %v29
    %665 = vmatprep.subr.mxu0 0.0
    %666 = vmatpush1.msra.mxu0 0.0
    %667 = vmatprep.subr.mxu0 0.0
    %668 = vmatpush1.msra.mxu0 0.0
    %669 = vmatprep.subr.mxu0 0.0
    %670 = vmatpush1.msra.mxu0 0.0
    %671 = vmatprep.subr.mxu0 0.0
    %672 = vmatpush1.msra.mxu0 0.0
    %673 = vmatprep.subr.mxu0 0.0
    %674 = vmatpush1.msra.mxu0 0.0
    %675 = vmatprep.subr.mxu0 0.0
    %676 = vmatpush1.msra.mxu0 0.0
    %677 = vmatprep.subr.mxu0 0.0
    %678 = vmatpush1.msra.mxu0 0.0
    %679 = vmatprep.subr.mxu0 0.0
    %680 = vmatpush1.msra.mxu0 0.0
    %681 = vmatprep.subr.mxu0 0.0
    %682 = vmatpush1.msra.mxu0 0.0
    %683 = vmatprep.subr.mxu0 0.0
    %684 = vmatpush1.msra.mxu0 0.0
    %685 = vmatprep.subr.mxu0 0.0
    %686 = vmatpush1.msra.mxu0 0.0
    %687 = vmatprep.subr.mxu0 0.0
    %688 = vmatpush1.msra.mxu0 0.0
    %689 = vmatprep.subr.mxu0 0.0
    %690 = vmatpush1.msra.mxu0 0.0
    %691 = vmatprep.subr.mxu0 0.0
    %692 = vmatpush1.msra.mxu0 0.0
    %693 = vmatprep.subr.mxu0 0.0
    %694 = vmatpush1.msra.mxu0 0.0
    %695 = vmatprep.subr.mxu0 0.0
    %696 = vmatpush1.msra.mxu0 0.0
    %697 = vmatprep.subr.mxu0 0.0
    %698 = vmatpush1.msra.mxu0 0.0
    %699 = vmatprep.subr.mxu0 0.0
    %700 = vmatpush1.msra.mxu0 0.0
    %701 = vmatprep.subr.mxu0 0.0
    %702 = vmatpush1.msra.mxu0 0.0
    %703 = vmatprep.subr.mxu0 0.0
    %704 = vmatpush1.msra.mxu0 0.0
    %705 = vmatprep.subr.mxu0 0.0
    %706 = vmatpush1.msra.mxu0 0.0
    %707 = vmatprep.subr.mxu0 0.0
    %708 = vmatpush1.msra.mxu0 0.0
    %709 = vmatprep.subr.mxu0 0.0
    %710 = vmatpush1.msra.mxu0 0.0
    %711 = vmatprep.subr.mxu0 0.0
    %712 = vmatpush1.msra.mxu0 0.0
    %713 = vmatprep.subr.mxu0 0.0
    %714 = vmatpush1.msra.mxu0 0.0
    %715 = vmatprep.subr.mxu0 0.0
    %716 = vmatpush1.msra.mxu0 0.0
    %717 = vmatprep.subr.mxu0 0.0
    %718 = vmatpush1.msra.mxu0 0.0
    %719 = vmatprep.subr.mxu0 0.0
    %720 = vmatpush1.msra.mxu0 0.0
    %721 = vmatprep.mubr.f32.mxu0 0.0
    %722 = vmatmul.mubr.f32.gmra.mrb[0].mxu0 %v655
    %v723 = vpop.f32.mrb[0].mxu0
    %v724 = vadd.f32 0.0, %v723
    %v725 = vpop.f32.mrb[0].mxu0
    %726 = vdwg.mxu0
    %v728 = vrot.slane %v724, 2
    %v730 = vadd.f32 %v119, %v728
    %v731 = vtanh.pop %v730
    %v733 = vsel %vm45, %v651, 0
    %735 = vmatprep.subr.mxu0 0.0
    %736 = vmatpush1.msra.mxu0 %v31
    %737 = vmatprep.subr.mxu0 0.0
    %738 = vmatpush1.msra.mxu0 %v32
    %739 = vmatprep.subr.mxu0 0.0
    %740 = vmatpush1.msra.mxu0 %v33
    %741 = vmatprep.subr.mxu0 0.0
    %742 = vmatpush1.msra.mxu0 %v34
    %743 = vmatprep.subr.mxu0 0.0
    %744 = vmatpush1.msra.mxu0 0.0
    %745 = vmatprep.subr.mxu0 0.0
    %746 = vmatpush1.msra.mxu0 0.0
    %747 = vmatprep.subr.mxu0 0.0
    %748 = vmatpush1.msra.mxu0 0.0
    %749 = vmatprep.subr.mxu0 0.0
    %750 = vmatpush1.msra.mxu0 0.0
    %751 = vmatprep.subr.mxu0 0.0
    %752 = vmatpush1.msra.mxu0 0.0
    %753 = vmatprep.subr.mxu0 0.0
    %754 = vmatpush1.msra.mxu0 0.0
    %755 = vmatprep.subr.mxu0 0.0
    %756 = vmatpush1.msra.mxu0 0.0
    %757 = vmatprep.subr.mxu0 0.0
    %758 = vmatpush1.msra.mxu0 0.0
    %759 = vmatprep.subr.mxu0 0.0
    %760 = vmatpush1.msra.mxu0 0.0
    %761 = vmatprep.subr.mxu0 0.0
    %762 = vmatpush1.msra.mxu0 0.0
    %763 = vmatprep.subr.mxu0 0.0
    %764 = vmatpush1.msra.mxu0 0.0
    %765 = vmatprep.subr.mxu0 0.0
    %766 = vmatpush1.msra.mxu0 0.0
    %767 = vmatprep.subr.mxu0 0.0
    %768 = vmatpush1.msra.mxu0 0.0
    %769 = vmatprep.subr.mxu0 0.0
    %770 = vmatpush1.msra.mxu0 0.0
    %771 = vmatprep.subr.mxu0 0.0
    %772 = vmatpush1.msra.mxu0 0.0
    %773 = vmatprep.subr.mxu0 0.0
    %774 = vmatpush1.msra.mxu0 0.0
    %775 = vmatprep.subr.mxu0 0.0
    %776 = vmatpush1.msra.mxu0 0.0
    %777 = vmatprep.subr.mxu0 0.0
    %778 = vmatpush1.msra.mxu0 0.0
    %779 = vmatprep.subr.mxu0 0.0
    %780 = vmatpush1.msra.mxu0 0.0
    %781 = vmatprep.subr.mxu0 0.0
    %782 = vmatpush1.msra.mxu0 0.0
    %783 = vmatprep.subr.mxu0 0.0
    %784 = vmatpush1.msra.mxu0 0.0
    %785 = vmatprep.subr.mxu0 0.0
    %786 = vmatpush1.msra.mxu0 0.0
    %787 = vmatprep.subr.mxu0 0.0
    %788 = vmatpush1.msra.mxu0 0.0
    %789 = vmatprep.subr.mxu0 0.0
    %790 = vmatpush1.msra.mxu0 0.0
    %791 = vmatprep.subr.mxu0 0.0
    %792 = vmatpush1.msra.mxu0 0.0
    %793 = vmatprep.subr.mxu0 0.0
    %794 = vmatpush1.msra.mxu0 0.0
    %795 = vmatprep.subr.mxu0 0.0
    %796 = vmatpush1.msra.mxu0 0.0
    %797 = vmatprep.subr.mxu0 0.0
    %798 = vmatpush1.msra.mxu0 0.0
    %799 = vmatprep.mubr.f32.mxu0 0.0
    %800 = vmatmul.mubr.f32.gmra.mrb[0].mxu0 %v733
    %v801 = vpop.f32.mrb[0].mxu0
    %v802 = vadd.f32 0.0, %v801
    %v803 = vpop.f32.mrb[0].mxu0
    %804 = vdwg.mxu0
    %805 = vmatprep.subr.mxu0 0.0
    %806 = vmatpush1.msra.mxu0 %v35
    %807 = vmatprep.subr.mxu0 0.0
    %808 = vmatpush1.msra.mxu0 %v36
    %809 = vmatprep.subr.mxu0 0.0
    %810 = vmatpush1.msra.mxu0 %v37
    %811 = vmatprep.subr.mxu0 0.0
    %812 = vmatpush1.msra.mxu0 %v38
    %813 = vmatprep.subr.mxu0 0.0
    %814 = vmatpush1.msra.mxu0 0.0
    %815 = vmatprep.subr.mxu0 0.0
    %816 = vmatpush1.msra.mxu0 0.0
    %817 = vmatprep.subr.mxu0 0.0
    %818 = vmatpush1.msra.mxu0 0.0
    %819 = vmatprep.subr.mxu0 0.0
    %820 = vmatpush1.msra.mxu0 0.0
    %821 = vmatprep.subr.mxu0 0.0
    %822 = vmatpush1.msra.mxu0 0.0
    %823 = vmatprep.subr.mxu0 0.0
    %824 = vmatpush1.msra.mxu0 0.0
    %825 = vmatprep.subr.mxu0 0.0
    %826 = vmatpush1.msra.mxu0 0.0
    %827 = vmatprep.subr.mxu0 0.0
    %828 = vmatpush1.msra.mxu0 0.0
    %829 = vmatprep.subr.mxu0 0.0
    %830 = vmatpush1.msra.mxu0 0.0
    %831 = vmatprep.subr.mxu0 0.0
    %832 = vmatpush1.msra.mxu0 0.0
    %833 = vmatprep.subr.mxu0 0.0
    %834 = vmatpush1.msra.mxu0 0.0
    %835 = vmatprep.subr.mxu0 0.0
    %836 = vmatpush1.msra.mxu0 0.0
    %837 = vmatprep.subr.mxu0 0.0
    %838 = vmatpush1.msra.mxu0 0.0
    %839 = vmatprep.subr.mxu0 0.0
    %840 = vmatpush1.msra.mxu0 0.0
    %841 = vmatprep.subr.mxu0 0.0
    %842 = vmatpush1.msra.mxu0 0.0
    %843 = vmatprep.subr.mxu0 0.0
    %844 = vmatpush1.msra.mxu0 0.0
    %845 = vmatprep.subr.mxu0 0.0
    %846 = vmatpush1.msra.mxu0 0.0
    %847 = vmatprep.subr.mxu0 0.0
    %848 = vmatpush1.msra.mxu0 0.0
    %849 = vmatprep.subr.mxu0 0.0
    %850 = vmatpush1.msra.mxu0 0.0
    %851 = vmatprep.subr.mxu0 0.0
    %852 = vmatpush1.msra.mxu0 0.0
    %853 = vmatprep.subr.mxu0 0.0
    %854 = vmatpush1.msra.mxu0 0.0
    %855 = vmatprep.subr.mxu0 0.0
    %856 = vmatpush1.msra.mxu0 0.0
    %857 = vmatprep.subr.mxu0 0.0
    %858 = vmatpush1.msra.mxu0 0.0
    %859 = vmatprep.subr.mxu0 0.0
    %860 = vmatpush1.msra.mxu0 0.0
    %861 = vmatprep.subr.mxu0 0.0
    %862 = vmatpush1.msra.mxu0 0.0
    %863 = vmatprep.subr.mxu0 0.0
    %864 = vmatpush1.msra.mxu0 0.0
    %865 = vmatprep.subr.mxu0 0.0
    %866 = vmatpush1.msra.mxu0 0.0
    %867 = vmatprep.subr.mxu0 0.0
    %868 = vmatpush1.msra.mxu0 0.0
    %869 = vmatprep.mubr.f32.mxu0 0.0
    %870 = vmatmul.mubr.f32.gmra.mrb[0].mxu0 %v655
    %v871 = vpop.f32.mrb[0].mxu0
    %v872 = vadd.f32 %v802, %v871
    %v873 = vpop.f32.mrb[0].mxu0
    %874 = vdwg.mxu0
    %v875 = vtanh.pop %v872
    %876 = vst.msk [vmem:[#allocation2 + $0x4] sm:$0x3] %vm427, %v875
    %v878 = vrot.slane %v731, 6
    %v879 = vsel %vm45, %v878, 0
    %881 = vmatprep.subr.mxu0 0.0
    %882 = vmatpush1.msra.mxu0 %v26
    %883 = vmatprep.subr.mxu0 0.0
    %884 = vmatpush1.msra.mxu0 %v27
    %885 = vmatprep.subr.mxu0 0.0
    %886 = vmatpush1.msra.mxu0 %v28
    %887 = vmatprep.subr.mxu0 0.0
    %888 = vmatpush1.msra.mxu0 %v29
    %889 = vmatprep.subr.mxu0 0.0
    %890 = vmatpush1.msra.mxu0 0.0
    %891 = vmatprep.subr.mxu0 0.0
    %892 = vmatpush1.msra.mxu0 0.0
    %893 = vmatprep.subr.mxu0 0.0
    %894 = vmatpush1.msra.mxu0 0.0
    %895 = vmatprep.subr.mxu0 0.0
    %896 = vmatpush1.msra.mxu0 0.0
    %897 = vmatprep.subr.mxu0 0.0
    %898 = vmatpush1.msra.mxu0 0.0
    %899 = vmatprep.subr.mxu0 0.0
    %900 = vmatpush1.msra.mxu0 0.0
    %901 = vmatprep.subr.mxu0 0.0
    %902 = vmatpush1.msra.mxu0 0.0
    %903 = vmatprep.subr.mxu0 0.0
    %904 = vmatpush1.msra.mxu0 0.0
    %905 = vmatprep.subr.mxu0 0.0
    %906 = vmatpush1.msra.mxu0 0.0
    %907 = vmatprep.subr.mxu0 0.0
    %908 = vmatpush1.msra.mxu0 0.0
    %909 = vmatprep.subr.mxu0 0.0
    %910 = vmatpush1.msra.mxu0 0.0
    %911 = vmatprep.subr.mxu0 0.0
    %912 = vmatpush1.msra.mxu0 0.0
    %913 = vmatprep.subr.mxu0 0.0
    %914 = vmatpush1.msra.mxu0 0.0
    %915 = vmatprep.subr.mxu0 0.0
    %916 = vmatpush1.msra.mxu0 0.0
    %917 = vmatprep.subr.mxu0 0.0
    %918 = vmatpush1.msra.mxu0 0.0
    %919 = vmatprep.subr.mxu0 0.0
    %920 = vmatpush1.msra.mxu0 0.0
    %921 = vmatprep.subr.mxu0 0.0
    %922 = vmatpush1.msra.mxu0 0.0
    %923 = vmatprep.subr.mxu0 0.0
    %924 = vmatpush1.msra.mxu0 0.0
    %925 = vmatprep.subr.mxu0 0.0
    %926 = vmatpush1.msra.mxu0 0.0
    %927 = vmatprep.subr.mxu0 0.0
    %928 = vmatpush1.msra.mxu0 0.0
    %929 = vmatprep.subr.mxu0 0.0
    %930 = vmatpush1.msra.mxu0 0.0
    %931 = vmatprep.subr.mxu0 0.0
    %932 = vmatpush1.msra.mxu0 0.0
    %933 = vmatprep.subr.mxu0 0.0
    %934 = vmatpush1.msra.mxu0 0.0
    %935 = vmatprep.subr.mxu0 0.0
    %936 = vmatpush1.msra.mxu0 0.0
    %937 = vmatprep.subr.mxu0 0.0
    %938 = vmatpush1.msra.mxu0 0.0
    %939 = vmatprep.subr.mxu0 0.0
    %940 = vmatpush1.msra.mxu0 0.0
    %941 = vmatprep.subr.mxu0 0.0
    %942 = vmatpush1.msra.mxu0 0.0
    %943 = vmatprep.subr.mxu0 0.0
    %944 = vmatpush1.msra.mxu0 0.0
    %945 = vmatprep.mubr.f32.mxu0 0.0
    %946 = vmatmul.mubr.f32.gmra.mrb[0].mxu0 %v879
    %v947 = vpop.f32.mrb[0].mxu0
    %v948 = vadd.f32 0.0, %v947
    %v949 = vpop.f32.mrb[0].mxu0
    %950 = vdwg.mxu0
    %v951 = vadd.f32 %v124, %v948
    %v952 = vtanh.pop %v951
    %v954 = vsel %vm45, %v875, 0
    %956 = vmatprep.subr.mxu0 0.0
    %957 = vmatpush1.msra.mxu0 %v31
    %958 = vmatprep.subr.mxu0 0.0
    %959 = vmatpush1.msra.mxu0 %v32
    %960 = vmatprep.subr.mxu0 0.0
    %961 = vmatpush1.msra.mxu0 %v33
    %962 = vmatprep.subr.mxu0 0.0
    %963 = vmatpush1.msra.mxu0 %v34
    %964 = vmatprep.subr.mxu0 0.0
    %965 = vmatpush1.msra.mxu0 0.0
    %966 = vmatprep.subr.mxu0 0.0
    %967 = vmatpush1.msra.mxu0 0.0
    %968 = vmatprep.subr.mxu0 0.0
    %969 = vmatpush1.msra.mxu0 0.0
    %970 = vmatprep.subr.mxu0 0.0
    %971 = vmatpush1.msra.mxu0 0.0
    %972 = vmatprep.subr.mxu0 0.0
    %973 = vmatpush1.msra.mxu0 0.0
    %974 = vmatprep.subr.mxu0 0.0
    %975 = vmatpush1.msra.mxu0 0.0
    %976 = vmatprep.subr.mxu0 0.0
    %977 = vmatpush1.msra.mxu0 0.0
    %978 = vmatprep.subr.mxu0 0.0
    %979 = vmatpush1.msra.mxu0 0.0
    %980 = vmatprep.subr.mxu0 0.0
    %981 = vmatpush1.msra.mxu0 0.0
    %982 = vmatprep.subr.mxu0 0.0
    %983 = vmatpush1.msra.mxu0 0.0
    %984 = vmatprep.subr.mxu0 0.0
    %985 = vmatpush1.msra.mxu0 0.0
    %986 = vmatprep.subr.mxu0 0.0
    %987 = vmatpush1.msra.mxu0 0.0
    %988 = vmatprep.subr.mxu0 0.0
    %989 = vmatpush1.msra.mxu0 0.0
    %990 = vmatprep.subr.mxu0 0.0
    %991 = vmatpush1.msra.mxu0 0.0
    %992 = vmatprep.subr.mxu0 0.0
    %993 = vmatpush1.msra.mxu0 0.0
    %994 = vmatprep.subr.mxu0 0.0
    %995 = vmatpush1.msra.mxu0 0.0
    %996 = vmatprep.subr.mxu0 0.0
    %997 = vmatpush1.msra.mxu0 0.0
    %998 = vmatprep.subr.mxu0 0.0
    %999 = vmatpush1.msra.mxu0 0.0
    %1000 = vmatprep.subr.mxu0 0.0
    %1001 = vmatpush1.msra.mxu0 0.0
    %1002 = vmatprep.subr.mxu0 0.0
    %1003 = vmatpush1.msra.mxu0 0.0
    %1004 = vmatprep.subr.mxu0 0.0
    %1005 = vmatpush1.msra.mxu0 0.0
    %1006 = vmatprep.subr.mxu0 0.0
    %1007 = vmatpush1.msra.mxu0 0.0
    %1008 = vmatprep.subr.mxu0 0.0
    %1009 = vmatpush1.msra.mxu0 0.0
    %1010 = vmatprep.subr.mxu0 0.0
    %1011 = vmatpush1.msra.mxu0 0.0
    %1012 = vmatprep.subr.mxu0 0.0
    %1013 = vmatpush1.msra.mxu0 0.0
    %1014 = vmatprep.subr.mxu0 0.0
    %1015 = vmatpush1.msra.mxu0 0.0
    %1016 = vmatprep.subr.mxu0 0.0
    %1017 = vmatpush1.msra.mxu0 0.0
    %1018 = vmatprep.subr.mxu0 0.0
    %1019 = vmatpush1.msra.mxu0 0.0
    %1020 = vmatprep.mubr.f32.mxu0 0.0
    %1021 = vmatmul.mubr.f32.gmra.mrb[0].mxu0 %v954
    %v1022 = vpop.f32.mrb[0].mxu0
    %v1023 = vadd.f32 0.0, %v1022
    %v1024 = vpop.f32.mrb[0].mxu0
    %1025 = vdwg.mxu0
    %1026 = vmatprep.subr.mxu0 0.0
    %1027 = vmatpush1.msra.mxu0 %v35
    %1028 = vmatprep.subr.mxu0 0.0
    %1029 = vmatpush1.msra.mxu0 %v36
    %1030 = vmatprep.subr.mxu0 0.0
    %1031 = vmatpush1.msra.mxu0 %v37
    %1032 = vmatprep.subr.mxu0 0.0
    %1033 = vmatpush1.msra.mxu0 %v38
    %1034 = vmatprep.subr.mxu0 0.0
    %1035 = vmatpush1.msra.mxu0 0.0
    %1036 = vmatprep.subr.mxu0 0.0
    %1037 = vmatpush1.msra.mxu0 0.0
    %1038 = vmatprep.subr.mxu0 0.0
    %1039 = vmatpush1.msra.mxu0 0.0
    %1040 = vmatprep.subr.mxu0 0.0
    %1041 = vmatpush1.msra.mxu0 0.0
    %1042 = vmatprep.subr.mxu0 0.0
    %1043 = vmatpush1.msra.mxu0 0.0
    %1044 = vmatprep.subr.mxu0 0.0
    %1045 = vmatpush1.msra.mxu0 0.0
    %1046 = vmatprep.subr.mxu0 0.0
    %1047 = vmatpush1.msra.mxu0 0.0
    %1048 = vmatprep.subr.mxu0 0.0
    %1049 = vmatpush1.msra.mxu0 0.0
    %1050 = vmatprep.subr.mxu0 0.0
    %1051 = vmatpush1.msra.mxu0 0.0
    %1052 = vmatprep.subr.mxu0 0.0
    %1053 = vmatpush1.msra.mxu0 0.0
    %1054 = vmatprep.subr.mxu0 0.0
    %1055 = vmatpush1.msra.mxu0 0.0
    %1056 = vmatprep.subr.mxu0 0.0
    %1057 = vmatpush1.msra.mxu0 0.0
    %1058 = vmatprep.subr.mxu0 0.0
    %1059 = vmatpush1.msra.mxu0 0.0
    %1060 = vmatprep.subr.mxu0 0.0
    %1061 = vmatpush1.msra.mxu0 0.0
    %1062 = vmatprep.subr.mxu0 0.0
    %1063 = vmatpush1.msra.mxu0 0.0
    %1064 = vmatprep.subr.mxu0 0.0
    %1065 = vmatpush1.msra.mxu0 0.0
    %1066 = vmatprep.subr.mxu0 0.0
    %1067 = vmatpush1.msra.mxu0 0.0
    %1068 = vmatprep.subr.mxu0 0.0
    %1069 = vmatpush1.msra.mxu0 0.0
    %1070 = vmatprep.subr.mxu0 0.0
    %1071 = vmatpush1.msra.mxu0 0.0
    %1072 = vmatprep.subr.mxu0 0.0
    %1073 = vmatpush1.msra.mxu0 0.0
    %1074 = vmatprep.subr.mxu0 0.0
    %1075 = vmatpush1.msra.mxu0 0.0
    %1076 = vmatprep.subr.mxu0 0.0
    %1077 = vmatpush1.msra.mxu0 0.0
    %1078 = vmatprep.subr.mxu0 0.0
    %1079 = vmatpush1.msra.mxu0 0.0
    %1080 = vmatprep.subr.mxu0 0.0
    %1081 = vmatpush1.msra.mxu0 0.0
    %1082 = vmatprep.subr.mxu0 0.0
    %1083 = vmatpush1.msra.mxu0 0.0
    %1084 = vmatprep.subr.mxu0 0.0
    %1085 = vmatpush1.msra.mxu0 0.0
    %1086 = vmatprep.subr.mxu0 0.0
    %1087 = vmatpush1.msra.mxu0 0.0
    %1088 = vmatprep.subr.mxu0 0.0
    %1089 = vmatpush1.msra.mxu0 0.0
    %1090 = vmatprep.mubr.f32.mxu0 0.0
    %1091 = vmatmul.mubr.f32.gmra.mrb[0].mxu0 %v879
    %v1092 = vpop.f32.mrb[0].mxu0
    %v1093 = vadd.f32 %v1023, %v1092
    %v1094 = vpop.f32.mrb[0].mxu0
    %1095 = vdwg.mxu0
    %v1096 = vtanh.pop %v1093
    %1097 = vst.msk [vmem:[#allocation2 + $0x6] sm:$0x3] %vm427, %v1096
    %v1099 = vsel %vm45, %v952, 0
    %1101 = vmatprep.subr.mxu0 0.0
    %1102 = vmatpush1.msra.mxu0 %v26
    %1103 = vmatprep.subr.mxu0 0.0
    %1104 = vmatpush1.msra.mxu0 %v27
    %1105 = vmatprep.subr.mxu0 0.0
    %1106 = vmatpush1.msra.mxu0 %v28
    %1107 = vmatprep.subr.mxu0 0.0
    %1108 = vmatpush1.msra.mxu0 %v29
    %1109 = vmatprep.subr.mxu0 0.0
    %1110 = vmatpush1.msra.mxu0 0.0
    %1111 = vmatprep.subr.mxu0 0.0
    %1112 = vmatpush1.msra.mxu0 0.0
    %1113 = vmatprep.subr.mxu0 0.0
    %1114 = vmatpush1.msra.mxu0 0.0
    %1115 = vmatprep.subr.mxu0 0.0
    %1116 = vmatpush1.msra.mxu0 0.0
    %1117 = vmatprep.subr.mxu0 0.0
    %1118 = vmatpush1.msra.mxu0 0.0
    %1119 = vmatprep.subr.mxu0 0.0
    %1120 = vmatpush1.msra.mxu0 0.0
    %1121 = vmatprep.subr.mxu0 0.0
    %1122 = vmatpush1.msra.mxu0 0.0
    %1123 = vmatprep.subr.mxu0 0.0
    %1124 = vmatpush1.msra.mxu0 0.0
    %1125 = vmatprep.subr.mxu0 0.0
    %1126 = vmatpush1.msra.mxu0 0.0
    %1127 = vmatprep.subr.mxu0 0.0
    %1128 = vmatpush1.msra.mxu0 0.0
    %1129 = vmatprep.subr.mxu0 0.0
    %1130 = vmatpush1.msra.mxu0 0.0
    %1131 = vmatprep.subr.mxu0 0.0
    %1132 = vmatpush1.msra.mxu0 0.0
    %1133 = vmatprep.subr.mxu0 0.0
    %1134 = vmatpush1.msra.mxu0 0.0
    %1135 = vmatprep.subr.mxu0 0.0
    %1136 = vmatpush1.msra.mxu0 0.0
    %1137 = vmatprep.subr.mxu0 0.0
    %1138 = vmatpush1.msra.mxu0 0.0
    %1139 = vmatprep.subr.mxu0 0.0
    %1140 = vmatpush1.msra.mxu0 0.0
    %1141 = vmatprep.subr.mxu0 0.0
    %1142 = vmatpush1.msra.mxu0 0.0
    %1143 = vmatprep.subr.mxu0 0.0
    %1144 = vmatpush1.msra.mxu0 0.0
    %1145 = vmatprep.subr.mxu0 0.0
    %1146 = vmatpush1.msra.mxu0 0.0
    %1147 = vmatprep.subr.mxu0 0.0
    %1148 = vmatpush1.msra.mxu0 0.0
    %1149 = vmatprep.subr.mxu0 0.0
    %1150 = vmatpush1.msra.mxu0 0.0
    %1151 = vmatprep.subr.mxu0 0.0
    %1152 = vmatpush1.msra.mxu0 0.0
    %1153 = vmatprep.subr.mxu0 0.0
    %1154 = vmatpush1.msra.mxu0 0.0
    %1155 = vmatprep.subr.mxu0 0.0
    %1156 = vmatpush1.msra.mxu0 0.0
    %1157 = vmatprep.subr.mxu0 0.0
    %1158 = vmatpush1.msra.mxu0 0.0
    %1159 = vmatprep.subr.mxu0 0.0
    %1160 = vmatpush1.msra.mxu0 0.0
    %1161 = vmatprep.subr.mxu0 0.0
    %1162 = vmatpush1.msra.mxu0 0.0
    %1163 = vmatprep.subr.mxu0 0.0
    %1164 = vmatpush1.msra.mxu0 0.0
    %1165 = vmatprep.mubr.f32.mxu0 0.0
    %1166 = vmatmul.mubr.f32.gmra.mrb[0].mxu0 %v1099
    %v1167 = vpop.f32.mrb[0].mxu0
    %v1168 = vadd.f32 0.0, %v1167
    %v1169 = vpop.f32.mrb[0].mxu0
    %1170 = vdwg.mxu0
    %v1172 = vrot.slane %v1168, 6
    %v1174 = vadd.f32 %v124, %v1172
    %v1175 = vtanh.pop %v1174
    %v1177 = vsel %vm45, %v1096, 0
    %1179 = vmatprep.subr.mxu0 0.0
    %1180 = vmatpush1.msra.mxu0 %v31
    %1181 = vmatprep.subr.mxu0 0.0
    %1182 = vmatpush1.msra.mxu0 %v32
    %1183 = vmatprep.subr.mxu0 0.0
    %1184 = vmatpush1.msra.mxu0 %v33
    %1185 = vmatprep.subr.mxu0 0.0
    %1186 = vmatpush1.msra.mxu0 %v34
    %1187 = vmatprep.subr.mxu0 0.0
    %1188 = vmatpush1.msra.mxu0 0.0
    %1189 = vmatprep.subr.mxu0 0.0
    %1190 = vmatpush1.msra.mxu0 0.0
    %1191 = vmatprep.subr.mxu0 0.0
    %1192 = vmatpush1.msra.mxu0 0.0
    %1193 = vmatprep.subr.mxu0 0.0
    %1194 = vmatpush1.msra.mxu0 0.0
    %1195 = vmatprep.subr.mxu0 0.0
    %1196 = vmatpush1.msra.mxu0 0.0
    %1197 = vmatprep.subr.mxu0 0.0
    %1198 = vmatpush1.msra.mxu0 0.0
    %1199 = vmatprep.subr.mxu0 0.0
    %1200 = vmatpush1.msra.mxu0 0.0
    %1201 = vmatprep.subr.mxu0 0.0
    %1202 = vmatpush1.msra.mxu0 0.0
    %1203 = vmatprep.subr.mxu0 0.0
    %1204 = vmatpush1.msra.mxu0 0.0
    %1205 = vmatprep.subr.mxu0 0.0
    %1206 = vmatpush1.msra.mxu0 0.0
    %1207 = vmatprep.subr.mxu0 0.0
    %1208 = vmatpush1.msra.mxu0 0.0
    %1209 = vmatprep.subr.mxu0 0.0
    %1210 = vmatpush1.msra.mxu0 0.0
    %1211 = vmatprep.subr.mxu0 0.0
    %1212 = vmatpush1.msra.mxu0 0.0
    %1213 = vmatprep.subr.mxu0 0.0
    %1214 = vmatpush1.msra.mxu0 0.0
    %1215 = vmatprep.subr.mxu0 0.0
    %1216 = vmatpush1.msra.mxu0 0.0
    %1217 = vmatprep.subr.mxu0 0.0
    %1218 = vmatpush1.msra.mxu0 0.0
    %1219 = vmatprep.subr.mxu0 0.0
    %1220 = vmatpush1.msra.mxu0 0.0
    %1221 = vmatprep.subr.mxu0 0.0
    %1222 = vmatpush1.msra.mxu0 0.0
    %1223 = vmatprep.subr.mxu0 0.0
    %1224 = vmatpush1.msra.mxu0 0.0
    %1225 = vmatprep.subr.mxu0 0.0
    %1226 = vmatpush1.msra.mxu0 0.0
    %1227 = vmatprep.subr.mxu0 0.0
    %1228 = vmatpush1.msra.mxu0 0.0
    %1229 = vmatprep.subr.mxu0 0.0
    %1230 = vmatpush1.msra.mxu0 0.0
    %1231 = vmatprep.subr.mxu0 0.0
    %1232 = vmatpush1.msra.mxu0 0.0
    %1233 = vmatprep.subr.mxu0 0.0
    %1234 = vmatpush1.msra.mxu0 0.0
    %1235 = vmatprep.subr.mxu0 0.0
    %1236 = vmatpush1.msra.mxu0 0.0
    %1237 = vmatprep.subr.mxu0 0.0
    %1238 = vmatpush1.msra.mxu0 0.0
    %1239 = vmatprep.subr.mxu0 0.0
    %1240 = vmatpush1.msra.mxu0 0.0
    %1241 = vmatprep.subr.mxu0 0.0
    %1242 = vmatpush1.msra.mxu0 0.0
    %1243 = vmatprep.mubr.f32.mxu0 0.0
    %1244 = vmatmul.mubr.f32.gmra.mrb[0].mxu0 %v1177
    %v1245 = vpop.f32.mrb[0].mxu0
    %v1246 = vadd.f32 0.0, %v1245
    %v1247 = vpop.f32.mrb[0].mxu0
    %1248 = vdwg.mxu0
    %1249 = vmatprep.subr.mxu0 0.0
    %1250 = vmatpush1.msra.mxu0 %v35
    %1251 = vmatprep.subr.mxu0 0.0
    %1252 = vmatpush1.msra.mxu0 %v36
    %1253 = vmatprep.subr.mxu0 0.0
    %1254 = vmatpush1.msra.mxu0 %v37
    %1255 = vmatprep.subr.mxu0 0.0
    %1256 = vmatpush1.msra.mxu0 %v38
    %1257 = vmatprep.subr.mxu0 0.0
    %1258 = vmatpush1.msra.mxu0 0.0
    %1259 = vmatprep.subr.mxu0 0.0
    %1260 = vmatpush1.msra.mxu0 0.0
    %1261 = vmatprep.subr.mxu0 0.0
    %1262 = vmatpush1.msra.mxu0 0.0
    %1263 = vmatprep.subr.mxu0 0.0
    %1264 = vmatpush1.msra.mxu0 0.0
    %1265 = vmatprep.subr.mxu0 0.0
    %1266 = vmatpush1.msra.mxu0 0.0
    %1267 = vmatprep.subr.mxu0 0.0
    %1268 = vmatpush1.msra.mxu0 0.0
    %1269 = vmatprep.subr.mxu0 0.0
    %1270 = vmatpush1.msra.mxu0 0.0
    %1271 = vmatprep.subr.mxu0 0.0
    %1272 = vmatpush1.msra.mxu0 0.0
    %1273 = vmatprep.subr.mxu0 0.0
    %1274 = vmatpush1.msra.mxu0 0.0
    %1275 = vmatprep.subr.mxu0 0.0
    %1276 = vmatpush1.msra.mxu0 0.0
    %1277 = vmatprep.subr.mxu0 0.0
    %1278 = vmatpush1.msra.mxu0 0.0
    %1279 = vmatprep.subr.mxu0 0.0
    %1280 = vmatpush1.msra.mxu0 0.0
    %1281 = vmatprep.subr.mxu0 0.0
    %1282 = vmatpush1.msra.mxu0 0.0
    %1283 = vmatprep.subr.mxu0 0.0
    %1284 = vmatpush1.msra.mxu0 0.0
    %1285 = vmatprep.subr.mxu0 0.0
    %1286 = vmatpush1.msra.mxu0 0.0
    %1287 = vmatprep.subr.mxu0 0.0
    %1288 = vmatpush1.msra.mxu0 0.0
    %1289 = vmatprep.subr.mxu0 0.0
    %1290 = vmatpush1.msra.mxu0 0.0
    %1291 = vmatprep.subr.mxu0 0.0
    %1292 = vmatpush1.msra.mxu0 0.0
    %1293 = vmatprep.subr.mxu0 0.0
    %1294 = vmatpush1.msra.mxu0 0.0
    %1295 = vmatprep.subr.mxu0 0.0
    %1296 = vmatpush1.msra.mxu0 0.0
    %1297 = vmatprep.subr.mxu0 0.0
    %1298 = vmatpush1.msra.mxu0 0.0
    %1299 = vmatprep.subr.mxu0 0.0
    %1300 = vmatpush1.msra.mxu0 0.0
    %1301 = vmatprep.subr.mxu0 0.0
    %1302 = vmatpush1.msra.mxu0 0.0
    %1303 = vmatprep.subr.mxu0 0.0
    %1304 = vmatpush1.msra.mxu0 0.0
    %1305 = vmatprep.subr.mxu0 0.0
    %1306 = vmatpush1.msra.mxu0 0.0
    %1307 = vmatprep.subr.mxu0 0.0
    %1308 = vmatpush1.msra.mxu0 0.0
    %1309 = vmatprep.subr.mxu0 0.0
    %1310 = vmatpush1.msra.mxu0 0.0
    %1311 = vmatprep.subr.mxu0 0.0
    %1312 = vmatpush1.msra.mxu0 0.0
    %1313 = vmatprep.mubr.f32.mxu0 0.0
    %1314 = vmatmul.mubr.f32.gmra.mrb[0].mxu0 %v1099
    %v1315 = vpop.f32.mrb[0].mxu0
    %v1316 = vadd.f32 %v1246, %v1315
    %v1317 = vpop.f32.mrb[0].mxu0
    %1318 = vdwg.mxu0
    %v1319 = vtanh.pop %v1316
    %1320 = vst.msk [vmem:[#allocation2 + $0x8] sm:$0x3] %vm427, %v1319
    %v1322 = vrot.slane %v1175, 2
    %v1323 = vsel %vm45, %v1322, 0
    %1325 = vmatprep.subr.mxu0 0.0
    %1326 = vmatpush1.msra.mxu0 %v26
    %1327 = vmatprep.subr.mxu0 0.0
    %1328 = vmatpush1.msra.mxu0 %v27
    %1329 = vmatprep.subr.mxu0 0.0
    %1330 = vmatpush1.msra.mxu0 %v28
    %1331 = vmatprep.subr.mxu0 0.0
    %1332 = vmatpush1.msra.mxu0 %v29
    %1333 = vmatprep.subr.mxu0 0.0
    %1334 = vmatpush1.msra.mxu0 0.0
    %1335 = vmatprep.subr.mxu0 0.0
    %1336 = vmatpush1.msra.mxu0 0.0
    %1337 = vmatprep.subr.mxu0 0.0
    %1338 = vmatpush1.msra.mxu0 0.0
    %1339 = vmatprep.subr.mxu0 0.0
    %1340 = vmatpush1.msra.mxu0 0.0
    %1341 = vmatprep.subr.mxu0 0.0
    %1342 = vmatpush1.msra.mxu0 0.0
    %1343 = vmatprep.subr.mxu0 0.0
    %1344 = vmatpush1.msra.mxu0 0.0
    %1345 = vmatprep.subr.mxu0 0.0
    %1346 = vmatpush1.msra.mxu0 0.0
    %1347 = vmatprep.subr.mxu0 0.0
    %1348 = vmatpush1.msra.mxu0 0.0
    %1349 = vmatprep.subr.mxu0 0.0
    %1350 = vmatpush1.msra.mxu0 0.0
    %1351 = vmatprep.subr.mxu0 0.0
    %1352 = vmatpush1.msra.mxu0 0.0
    %1353 = vmatprep.subr.mxu0 0.0
    %1354 = vmatpush1.msra.mxu0 0.0
    %1355 = vmatprep.subr.mxu0 0.0
    %1356 = vmatpush1.msra.mxu0 0.0
    %1357 = vmatprep.subr.mxu0 0.0
    %1358 = vmatpush1.msra.mxu0 0.0
    %1359 = vmatprep.subr.mxu0 0.0
    %1360 = vmatpush1.msra.mxu0 0.0
    %1361 = vmatprep.subr.mxu0 0.0
    %1362 = vmatpush1.msra.mxu0 0.0
    %1363 = vmatprep.subr.mxu0 0.0
    %1364 = vmatpush1.msra.mxu0 0.0
    %1365 = vmatprep.subr.mxu0 0.0
    %1366 = vmatpush1.msra.mxu0 0.0
    %1367 = vmatprep.subr.mxu0 0.0
    %1368 = vmatpush1.msra.mxu0 0.0
    %1369 = vmatprep.subr.mxu0 0.0
    %1370 = vmatpush1.msra.mxu0 0.0
    %1371 = vmatprep.subr.mxu0 0.0
    %1372 = vmatpush1.msra.mxu0 0.0
    %1373 = vmatprep.subr.mxu0 0.0
    %1374 = vmatpush1.msra.mxu0 0.0
    %1375 = vmatprep.subr.mxu0 0.0
    %1376 = vmatpush1.msra.mxu0 0.0
    %1377 = vmatprep.subr.mxu0 0.0
    %1378 = vmatpush1.msra.mxu0 0.0
    %1379 = vmatprep.subr.mxu0 0.0
    %1380 = vmatpush1.msra.mxu0 0.0
    %1381 = vmatprep.subr.mxu0 0.0
    %1382 = vmatpush1.msra.mxu0 0.0
    %1383 = vmatprep.subr.mxu0 0.0
    %1384 = vmatpush1.msra.mxu0 0.0
    %1385 = vmatprep.subr.mxu0 0.0
    %1386 = vmatpush1.msra.mxu0 0.0
    %1387 = vmatprep.subr.mxu0 0.0
    %1388 = vmatpush1.msra.mxu0 0.0
    %1389 = vmatprep.mubr.f32.mxu0 0.0
    %1390 = vmatmul.mubr.f32.gmra.mrb[0].mxu0 %v1323
    %v1391 = vpop.f32.mrb[0].mxu0
    %v1392 = vadd.f32 0.0, %v1391
    %v1393 = vpop.f32.mrb[0].mxu0
    %1394 = vdwg.mxu0
    %v1396 = vrot.slane %v1392, 4
    %v1398 = vadd.f32 %v124, %v1396
    %v1399 = vtanh.pop %v1398
    %v1401 = vsel %vm45, %v1319, 0
    %1403 = vmatprep.subr.mxu0 0.0
    %1404 = vmatpush1.msra.mxu0 %v31
    %1405 = vmatprep.subr.mxu0 0.0
    %1406 = vmatpush1.msra.mxu0 %v32
    %1407 = vmatprep.subr.mxu0 0.0
    %1408 = vmatpush1.msra.mxu0 %v33
    %1409 = vmatprep.subr.mxu0 0.0
    %1410 = vmatpush1.msra.mxu0 %v34
    %1411 = vmatprep.subr.mxu0 0.0
    %1412 = vmatpush1.msra.mxu0 0.0
    %1413 = vmatprep.subr.mxu0 0.0
    %1414 = vmatpush1.msra.mxu0 0.0
    %1415 = vmatprep.subr.mxu0 0.0
    %1416 = vmatpush1.msra.mxu0 0.0
    %1417 = vmatprep.subr.mxu0 0.0
    %1418 = vmatpush1.msra.mxu0 0.0
    %1419 = vmatprep.subr.mxu0 0.0
    %1420 = vmatpush1.msra.mxu0 0.0
    %1421 = vmatprep.subr.mxu0 0.0
    %1422 = vmatpush1.msra.mxu0 0.0
    %1423 = vmatprep.subr.mxu0 0.0
    %1424 = vmatpush1.msra.mxu0 0.0
    %1425 = vmatprep.subr.mxu0 0.0
    %1426 = vmatpush1.msra.mxu0 0.0
    %1427 = vmatprep.subr.mxu0 0.0
    %1428 = vmatpush1.msra.mxu0 0.0
    %1429 = vmatprep.subr.mxu0 0.0
    %1430 = vmatpush1.msra.mxu0 0.0
    %1431 = vmatprep.subr.mxu0 0.0
    %1432 = vmatpush1.msra.mxu0 0.0
    %1433 = vmatprep.subr.mxu0 0.0
    %1434 = vmatpush1.msra.mxu0 0.0
    %1435 = vmatprep.subr.mxu0 0.0
    %1436 = vmatpush1.msra.mxu0 0.0
    %1437 = vmatprep.subr.mxu0 0.0
    %1438 = vmatpush1.msra.mxu0 0.0
    %1439 = vmatprep.subr.mxu0 0.0
    %1440 = vmatpush1.msra.mxu0 0.0
    %1441 = vmatprep.subr.mxu0 0.0
    %1442 = vmatpush1.msra.mxu0 0.0
    %1443 = vmatprep.subr.mxu0 0.0
    %1444 = vmatpush1.msra.mxu0 0.0
    %1445 = vmatprep.subr.mxu0 0.0
    %1446 = vmatpush1.msra.mxu0 0.0
    %1447 = vmatprep.subr.mxu0 0.0
    %1448 = vmatpush1.msra.mxu0 0.0
    %1449 = vmatprep.subr.mxu0 0.0
    %1450 = vmatpush1.msra.mxu0 0.0
    %1451 = vmatprep.subr.mxu0 0.0
    %1452 = vmatpush1.msra.mxu0 0.0
    %1453 = vmatprep.subr.mxu0 0.0
    %1454 = vmatpush1.msra.mxu0 0.0
    %1455 = vmatprep.subr.mxu0 0.0
    %1456 = vmatpush1.msra.mxu0 0.0
    %1457 = vmatprep.subr.mxu0 0.0
    %1458 = vmatpush1.msra.mxu0 0.0
    %1459 = vmatprep.subr.mxu0 0.0
    %1460 = vmatpush1.msra.mxu0 0.0
    %1461 = vmatprep.subr.mxu0 0.0
    %1462 = vmatpush1.msra.mxu0 0.0
    %1463 = vmatprep.subr.mxu0 0.0
    %1464 = vmatpush1.msra.mxu0 0.0
    %1465 = vmatprep.subr.mxu0 0.0
    %1466 = vmatpush1.msra.mxu0 0.0
    %1467 = vmatprep.mubr.f32.mxu0 0.0
    %1468 = vmatmul.mubr.f32.gmra.mrb[0].mxu0 %v1401
    %v1469 = vpop.f32.mrb[0].mxu0
    %v1470 = vadd.f32 0.0, %v1469
    %v1471 = vpop.f32.mrb[0].mxu0
    %1472 = vdwg.mxu0
    %1473 = vmatprep.subr.mxu0 0.0
    %1474 = vmatpush1.msra.mxu0 %v35
    %1475 = vmatprep.subr.mxu0 0.0
    %1476 = vmatpush1.msra.mxu0 %v36
    %1477 = vmatprep.subr.mxu0 0.0
    %1478 = vmatpush1.msra.mxu0 %v37
    %1479 = vmatprep.subr.mxu0 0.0
    %1480 = vmatpush1.msra.mxu0 %v38
    %1481 = vmatprep.subr.mxu0 0.0
    %1482 = vmatpush1.msra.mxu0 0.0
    %1483 = vmatprep.subr.mxu0 0.0
    %1484 = vmatpush1.msra.mxu0 0.0
    %1485 = vmatprep.subr.mxu0 0.0
    %1486 = vmatpush1.msra.mxu0 0.0
    %1487 = vmatprep.subr.mxu0 0.0
    %1488 = vmatpush1.msra.mxu0 0.0
    %1489 = vmatprep.subr.mxu0 0.0
    %1490 = vmatpush1.msra.mxu0 0.0
    %1491 = vmatprep.subr.mxu0 0.0
    %1492 = vmatpush1.msra.mxu0 0.0
    %1493 = vmatprep.subr.mxu0 0.0
    %1494 = vmatpush1.msra.mxu0 0.0
    %1495 = vmatprep.subr.mxu0 0.0
    %1496 = vmatpush1.msra.mxu0 0.0
    %1497 = vmatprep.subr.mxu0 0.0
    %1498 = vmatpush1.msra.mxu0 0.0
    %1499 = vmatprep.subr.mxu0 0.0
    %1500 = vmatpush1.msra.mxu0 0.0
    %1501 = vmatprep.subr.mxu0 0.0
    %1502 = vmatpush1.msra.mxu0 0.0
    %1503 = vmatprep.subr.mxu0 0.0
    %1504 = vmatpush1.msra.mxu0 0.0
    %1505 = vmatprep.subr.mxu0 0.0
    %1506 = vmatpush1.msra.mxu0 0.0
    %1507 = vmatprep.subr.mxu0 0.0
    %1508 = vmatpush1.msra.mxu0 0.0
    %1509 = vmatprep.subr.mxu0 0.0
    %1510 = vmatpush1.msra.mxu0 0.0
    %1511 = vmatprep.subr.mxu0 0.0
    %1512 = vmatpush1.msra.mxu0 0.0
    %1513 = vmatprep.subr.mxu0 0.0
    %1514 = vmatpush1.msra.mxu0 0.0
    %1515 = vmatprep.subr.mxu0 0.0
    %1516 = vmatpush1.msra.mxu0 0.0
    %1517 = vmatprep.subr.mxu0 0.0
    %1518 = vmatpush1.msra.mxu0 0.0
    %1519 = vmatprep.subr.mxu0 0.0
    %1520 = vmatpush1.msra.mxu0 0.0
    %1521 = vmatprep.subr.mxu0 0.0
    %1522 = vmatpush1.msra.mxu0 0.0
    %1523 = vmatprep.subr.mxu0 0.0
    %1524 = vmatpush1.msra.mxu0 0.0
    %1525 = vmatprep.subr.mxu0 0.0
    %1526 = vmatpush1.msra.mxu0 0.0
    %1527 = vmatprep.subr.mxu0 0.0
    %1528 = vmatpush1.msra.mxu0 0.0
    %1529 = vmatprep.subr.mxu0 0.0
    %1530 = vmatpush1.msra.mxu0 0.0
    %1531 = vmatprep.subr.mxu0 0.0
    %1532 = vmatpush1.msra.mxu0 0.0
    %1533 = vmatprep.subr.mxu0 0.0
    %1534 = vmatpush1.msra.mxu0 0.0
    %1535 = vmatprep.subr.mxu0 0.0
    %1536 = vmatpush1.msra.mxu0 0.0
    %1537 = vmatprep.mubr.f32.mxu0 0.0
    %1538 = vmatmul.mubr.f32.gmra.mrb[0].mxu0 %v1323
    %v1539 = vpop.f32.mrb[0].mxu0
    %v1540 = vadd.f32 %v1470, %v1539
    %v1541 = vpop.f32.mrb[0].mxu0
    %1542 = vdwg.mxu0
    %v1543 = vtanh.pop %v1540
    %1544 = vst.msk [vmem:[#allocation2 + $0xa] sm:$0x3] %vm427, %v1543
    %v1546 = vrot.slane %v1399, 4
    %v1547 = vsel %vm45, %v1546, 0
    %1549 = vmatprep.subr.mxu0 0.0
    %1550 = vmatpush1.msra.mxu0 %v26
    %1551 = vmatprep.subr.mxu0 0.0
    %1552 = vmatpush1.msra.mxu0 %v27
    %1553 = vmatprep.subr.mxu0 0.0
    %1554 = vmatpush1.msra.mxu0 %v28
    %1555 = vmatprep.subr.mxu0 0.0
    %1556 = vmatpush1.msra.mxu0 %v29
    %1557 = vmatprep.subr.mxu0 0.0
    %1558 = vmatpush1.msra.mxu0 0.0
    %1559 = vmatprep.subr.mxu0 0.0
    %1560 = vmatpush1.msra.mxu0 0.0
    %1561 = vmatprep.subr.mxu0 0.0
    %1562 = vmatpush1.msra.mxu0 0.0
    %1563 = vmatprep.subr.mxu0 0.0
    %1564 = vmatpush1.msra.mxu0 0.0
    %1565 = vmatprep.subr.mxu0 0.0
    %1566 = vmatpush1.msra.mxu0 0.0
    %1567 = vmatprep.subr.mxu0 0.0
    %1568 = vmatpush1.msra.mxu0 0.0
    %1569 = vmatprep.subr.mxu0 0.0
    %1570 = vmatpush1.msra.mxu0 0.0
    %1571 = vmatprep.subr.mxu0 0.0
    %1572 = vmatpush1.msra.mxu0 0.0
    %1573 = vmatprep.subr.mxu0 0.0
    %1574 = vmatpush1.msra.mxu0 0.0
    %1575 = vmatprep.subr.mxu0 0.0
    %1576 = vmatpush1.msra.mxu0 0.0
    %1577 = vmatprep.subr.mxu0 0.0
    %1578 = vmatpush1.msra.mxu0 0.0
    %1579 = vmatprep.subr.mxu0 0.0
    %1580 = vmatpush1.msra.mxu0 0.0
    %1581 = vmatprep.subr.mxu0 0.0
    %1582 = vmatpush1.msra.mxu0 0.0
    %1583 = vmatprep.subr.mxu0 0.0
    %1584 = vmatpush1.msra.mxu0 0.0
    %1585 = vmatprep.subr.mxu0 0.0
    %1586 = vmatpush1.msra.mxu0 0.0
    %1587 = vmatprep.subr.mxu0 0.0
    %1588 = vmatpush1.msra.mxu0 0.0
    %1589 = vmatprep.subr.mxu0 0.0
    %1590 = vmatpush1.msra.mxu0 0.0
    %1591 = vmatprep.subr.mxu0 0.0
    %1592 = vmatpush1.msra.mxu0 0.0
    %1593 = vmatprep.subr.mxu0 0.0
    %1594 = vmatpush1.msra.mxu0 0.0
    %1595 = vmatprep.subr.mxu0 0.0
    %1596 = vmatpush1.msra.mxu0 0.0
    %1597 = vmatprep.subr.mxu0 0.0
    %1598 = vmatpush1.msra.mxu0 0.0
    %1599 = vmatprep.subr.mxu0 0.0
    %1600 = vmatpush1.msra.mxu0 0.0
    %1601 = vmatprep.subr.mxu0 0.0
    %1602 = vmatpush1.msra.mxu0 0.0
    %1603 = vmatprep.subr.mxu0 0.0
    %1604 = vmatpush1.msra.mxu0 0.0
    %1605 = vmatprep.subr.mxu0 0.0
    %1606 = vmatpush1.msra.mxu0 0.0
    %1607 = vmatprep.subr.mxu0 0.0
    %1608 = vmatpush1.msra.mxu0 0.0
    %1609 = vmatprep.subr.mxu0 0.0
    %1610 = vmatpush1.msra.mxu0 0.0
    %1611 = vmatprep.subr.mxu0 0.0
    %1612 = vmatpush1.msra.mxu0 0.0
    %1613 = vmatprep.mubr.f32.mxu0 0.0
    %1614 = vmatmul.mubr.f32.gmra.mrb[0].mxu0 %v1547
    %v1615 = vpop.f32.mrb[0].mxu0
    %v1616 = vadd.f32 0.0, %v1615
    %v1617 = vpop.f32.mrb[0].mxu0
    %1618 = vdwg.mxu0
    %v1620 = vrot.slane %v1616, 2
    %v1622 = vadd.f32 %v124, %v1620
    %v1623 = vtanh.pop %v1622
    %v1625 = vsel %vm45, %v1543, 0
    %1627 = vmatprep.subr.mxu0 0.0
    %1628 = vmatpush1.msra.mxu0 %v31
    %1629 = vmatprep.subr.mxu0 0.0
    %1630 = vmatpush1.msra.mxu0 %v32
    %1631 = vmatprep.subr.mxu0 0.0
    %1632 = vmatpush1.msra.mxu0 %v33
    %1633 = vmatprep.subr.mxu0 0.0
    %1634 = vmatpush1.msra.mxu0 %v34
    %1635 = vmatprep.subr.mxu0 0.0
    %1636 = vmatpush1.msra.mxu0 0.0
    %1637 = vmatprep.subr.mxu0 0.0
    %1638 = vmatpush1.msra.mxu0 0.0
    %1639 = vmatprep.subr.mxu0 0.0
    %1640 = vmatpush1.msra.mxu0 0.0
    %1641 = vmatprep.subr.mxu0 0.0
    %1642 = vmatpush1.msra.mxu0 0.0
    %1643 = vmatprep.subr.mxu0 0.0
    %1644 = vmatpush1.msra.mxu0 0.0
    %1645 = vmatprep.subr.mxu0 0.0
    %1646 = vmatpush1.msra.mxu0 0.0
    %1647 = vmatprep.subr.mxu0 0.0
    %1648 = vmatpush1.msra.mxu0 0.0
    %1649 = vmatprep.subr.mxu0 0.0
    %1650 = vmatpush1.msra.mxu0 0.0
    %1651 = vmatprep.subr.mxu0 0.0
    %1652 = vmatpush1.msra.mxu0 0.0
    %1653 = vmatprep.subr.mxu0 0.0
    %1654 = vmatpush1.msra.mxu0 0.0
    %1655 = vmatprep.subr.mxu0 0.0
    %1656 = vmatpush1.msra.mxu0 0.0
    %1657 = vmatprep.subr.mxu0 0.0
    %1658 = vmatpush1.msra.mxu0 0.0
    %1659 = vmatprep.subr.mxu0 0.0
    %1660 = vmatpush1.msra.mxu0 0.0
    %1661 = vmatprep.subr.mxu0 0.0
    %1662 = vmatpush1.msra.mxu0 0.0
    %1663 = vmatprep.subr.mxu0 0.0
    %1664 = vmatpush1.msra.mxu0 0.0
    %1665 = vmatprep.subr.mxu0 0.0
    %1666 = vmatpush1.msra.mxu0 0.0
    %1667 = vmatprep.subr.mxu0 0.0
    %1668 = vmatpush1.msra.mxu0 0.0
    %1669 = vmatprep.subr.mxu0 0.0
    %1670 = vmatpush1.msra.mxu0 0.0
    %1671 = vmatprep.subr.mxu0 0.0
    %1672 = vmatpush1.msra.mxu0 0.0
    %1673 = vmatprep.subr.mxu0 0.0
    %1674 = vmatpush1.msra.mxu0 0.0
    %1675 = vmatprep.subr.mxu0 0.0
    %1676 = vmatpush1.msra.mxu0 0.0
    %1677 = vmatprep.subr.mxu0 0.0
    %1678 = vmatpush1.msra.mxu0 0.0
    %1679 = vmatprep.subr.mxu0 0.0
    %1680 = vmatpush1.msra.mxu0 0.0
    %1681 = vmatprep.subr.mxu0 0.0
    %1682 = vmatpush1.msra.mxu0 0.0
    %1683 = vmatprep.subr.mxu0 0.0
    %1684 = vmatpush1.msra.mxu0 0.0
    %1685 = vmatprep.subr.mxu0 0.0
    %1686 = vmatpush1.msra.mxu0 0.0
    %1687 = vmatprep.subr.mxu0 0.0
    %1688 = vmatpush1.msra.mxu0 0.0
    %1689 = vmatprep.subr.mxu0 0.0
    %1690 = vmatpush1.msra.mxu0 0.0
    %1691 = vmatprep.mubr.f32.mxu0 0.0
    %1692 = vmatmul.mubr.f32.gmra.mrb[0].mxu0 %v1625
    %v1693 = vpop.f32.mrb[0].mxu0
    %v1694 = vadd.f32 0.0, %v1693
    %v1695 = vpop.f32.mrb[0].mxu0
    %1696 = vdwg.mxu0
    %1697 = vmatprep.subr.mxu0 0.0
    %1698 = vmatpush1.msra.mxu0 %v35
    %1699 = vmatprep.subr.mxu0 0.0
    %1700 = vmatpush1.msra.mxu0 %v36
    %1701 = vmatprep.subr.mxu0 0.0
    %1702 = vmatpush1.msra.mxu0 %v37
    %1703 = vmatprep.subr.mxu0 0.0
    %1704 = vmatpush1.msra.mxu0 %v38
    %1705 = vmatprep.subr.mxu0 0.0
    %1706 = vmatpush1.msra.mxu0 0.0
    %1707 = vmatprep.subr.mxu0 0.0
    %1708 = vmatpush1.msra.mxu0 0.0
    %1709 = vmatprep.subr.mxu0 0.0
    %1710 = vmatpush1.msra.mxu0 0.0
    %1711 = vmatprep.subr.mxu0 0.0
    %1712 = vmatpush1.msra.mxu0 0.0
    %1713 = vmatprep.subr.mxu0 0.0
    %1714 = vmatpush1.msra.mxu0 0.0
    %1715 = vmatprep.subr.mxu0 0.0
    %1716 = vmatpush1.msra.mxu0 0.0
    %1717 = vmatprep.subr.mxu0 0.0
    %1718 = vmatpush1.msra.mxu0 0.0
    %1719 = vmatprep.subr.mxu0 0.0
    %1720 = vmatpush1.msra.mxu0 0.0
    %1721 = vmatprep.subr.mxu0 0.0
    %1722 = vmatpush1.msra.mxu0 0.0
    %1723 = vmatprep.subr.mxu0 0.0
    %1724 = vmatpush1.msra.mxu0 0.0
    %1725 = vmatprep.subr.mxu0 0.0
    %1726 = vmatpush1.msra.mxu0 0.0
    %1727 = vmatprep.subr.mxu0 0.0
    %1728 = vmatpush1.msra.mxu0 0.0
    %1729 = vmatprep.subr.mxu0 0.0
    %1730 = vmatpush1.msra.mxu0 0.0
    %1731 = vmatprep.subr.mxu0 0.0
    %1732 = vmatpush1.msra.mxu0 0.0
    %1733 = vmatprep.subr.mxu0 0.0
    %1734 = vmatpush1.msra.mxu0 0.0
    %1735 = vmatprep.subr.mxu0 0.0
    %1736 = vmatpush1.msra.mxu0 0.0
    %1737 = vmatprep.subr.mxu0 0.0
    %1738 = vmatpush1.msra.mxu0 0.0
    %1739 = vmatprep.subr.mxu0 0.0
    %1740 = vmatpush1.msra.mxu0 0.0
    %1741 = vmatprep.subr.mxu0 0.0
    %1742 = vmatpush1.msra.mxu0 0.0
    %1743 = vmatprep.subr.mxu0 0.0
    %1744 = vmatpush1.msra.mxu0 0.0
    %1745 = vmatprep.subr.mxu0 0.0
    %1746 = vmatpush1.msra.mxu0 0.0
    %1747 = vmatprep.subr.mxu0 0.0
    %1748 = vmatpush1.msra.mxu0 0.0
    %1749 = vmatprep.subr.mxu0 0.0
    %1750 = vmatpush1.msra.mxu0 0.0
    %1751 = vmatprep.subr.mxu0 0.0
    %1752 = vmatpush1.msra.mxu0 0.0
    %1753 = vmatprep.subr.mxu0 0.0
    %1754 = vmatpush1.msra.mxu0 0.0
    %1755 = vmatprep.subr.mxu0 0.0
    %1756 = vmatpush1.msra.mxu0 0.0
    %1757 = vmatprep.subr.mxu0 0.0
    %1758 = vmatpush1.msra.mxu0 0.0
    %1759 = vmatprep.subr.mxu0 0.0
    %1760 = vmatpush1.msra.mxu0 0.0
    %1761 = vmatprep.mubr.f32.mxu0 0.0
    %1762 = vmatmul.mubr.f32.gmra.mrb[0].mxu0 %v1547
    %v1763 = vpop.f32.mrb[0].mxu0
    %v1764 = vadd.f32 %v1694, %v1763
    %v1765 = vpop.f32.mrb[0].mxu0
    %1766 = vdwg.mxu0
    %v1767 = vtanh.pop %v1764
    %1768 = vst.msk [vmem:[#allocation2 + $0xc] sm:$0x3] %vm427, %v1767
    %v1770 = vsel %vm45, %v1767, 0
    %1772 = vmatprep.subr.mxu0 0.0
    %1773 = vmatpush1.msra.mxu0 %v31
    %1774 = vmatprep.subr.mxu0 0.0
    %1775 = vmatpush1.msra.mxu0 %v32
    %1776 = vmatprep.subr.mxu0 0.0
    %1777 = vmatpush1.msra.mxu0 %v33
    %1778 = vmatprep.subr.mxu0 0.0
    %1779 = vmatpush1.msra.mxu0 %v34
    %1780 = vmatprep.subr.mxu0 0.0
    %1781 = vmatpush1.msra.mxu0 0.0
    %1782 = vmatprep.subr.mxu0 0.0
    %1783 = vmatpush1.msra.mxu0 0.0
    %1784 = vmatprep.subr.mxu0 0.0
    %1785 = vmatpush1.msra.mxu0 0.0
    %1786 = vmatprep.subr.mxu0 0.0
    %1787 = vmatpush1.msra.mxu0 0.0
    %1788 = vmatprep.subr.mxu0 0.0
    %1789 = vmatpush1.msra.mxu0 0.0
    %1790 = vmatprep.subr.mxu0 0.0
    %1791 = vmatpush1.msra.mxu0 0.0
    %1792 = vmatprep.subr.mxu0 0.0
    %1793 = vmatpush1.msra.mxu0 0.0
    %1794 = vmatprep.subr.mxu0 0.0
    %1795 = vmatpush1.msra.mxu0 0.0
    %1796 = vmatprep.subr.mxu0 0.0
    %1797 = vmatpush1.msra.mxu0 0.0
    %1798 = vmatprep.subr.mxu0 0.0
    %1799 = vmatpush1.msra.mxu0 0.0
    %1800 = vmatprep.subr.mxu0 0.0
    %1801 = vmatpush1.msra.mxu0 0.0
    %1802 = vmatprep.subr.mxu0 0.0
    %1803 = vmatpush1.msra.mxu0 0.0
    %1804 = vmatprep.subr.mxu0 0.0
    %1805 = vmatpush1.msra.mxu0 0.0
    %1806 = vmatprep.subr.mxu0 0.0
    %1807 = vmatpush1.msra.mxu0 0.0
    %1808 = vmatprep.subr.mxu0 0.0
    %1809 = vmatpush1.msra.mxu0 0.0
    %1810 = vmatprep.subr.mxu0 0.0
    %1811 = vmatpush1.msra.mxu0 0.0
    %1812 = vmatprep.subr.mxu0 0.0
    %1813 = vmatpush1.msra.mxu0 0.0
    %1814 = vmatprep.subr.mxu0 0.0
    %1815 = vmatpush1.msra.mxu0 0.0
    %1816 = vmatprep.subr.mxu0 0.0
    %1817 = vmatpush1.msra.mxu0 0.0
    %1818 = vmatprep.subr.mxu0 0.0
    %1819 = vmatpush1.msra.mxu0 0.0
    %1820 = vmatprep.subr.mxu0 0.0
    %1821 = vmatpush1.msra.mxu0 0.0
    %1822 = vmatprep.subr.mxu0 0.0
    %1823 = vmatpush1.msra.mxu0 0.0
    %1824 = vmatprep.subr.mxu0 0.0
    %1825 = vmatpush1.msra.mxu0 0.0
    %1826 = vmatprep.subr.mxu0 0.0
    %1827 = vmatpush1.msra.mxu0 0.0
    %1828 = vmatprep.subr.mxu0 0.0
    %1829 = vmatpush1.msra.mxu0 0.0
    %1830 = vmatprep.subr.mxu0 0.0
    %1831 = vmatpush1.msra.mxu0 0.0
    %1832 = vmatprep.subr.mxu0 0.0
    %1833 = vmatpush1.msra.mxu0 0.0
    %1834 = vmatprep.subr.mxu0 0.0
    %1835 = vmatpush1.msra.mxu0 0.0
    %1836 = vmatprep.mubr.f32.mxu0 0.0
    %1837 = vmatmul.mubr.f32.gmra.mrb[0].mxu0 %v1770
    %v1838 = vpop.f32.mrb[0].mxu0
    %v1839 = vadd.f32 0.0, %v1838
    %v1840 = vpop.f32.mrb[0].mxu0
    %1841 = vdwg.mxu0
    %v1843 = vrot.slane %v1623, 6
    %v1844 = vsel %vm45, %v1843, 0
    %1846 = vmatprep.subr.mxu0 0.0
    %1847 = vmatpush1.msra.mxu0 %v35
    %1848 = vmatprep.subr.mxu0 0.0
    %1849 = vmatpush1.msra.mxu0 %v36
    %1850 = vmatprep.subr.mxu0 0.0
    %1851 = vmatpush1.msra.mxu0 %v37
    %1852 = vmatprep.subr.mxu0 0.0
    %1853 = vmatpush1.msra.mxu0 %v38
    %1854 = vmatprep.subr.mxu0 0.0
    %1855 = vmatpush1.msra.mxu0 0.0
    %1856 = vmatprep.subr.mxu0 0.0
    %1857 = vmatpush1.msra.mxu0 0.0
    %1858 = vmatprep.subr.mxu0 0.0
    %1859 = vmatpush1.msra.mxu0 0.0
    %1860 = vmatprep.subr.mxu0 0.0
    %1861 = vmatpush1.msra.mxu0 0.0
    %1862 = vmatprep.subr.mxu0 0.0
    %1863 = vmatpush1.msra.mxu0 0.0
    %1864 = vmatprep.subr.mxu0 0.0
    %1865 = vmatpush1.msra.mxu0 0.0
    %1866 = vmatprep.subr.mxu0 0.0
    %1867 = vmatpush1.msra.mxu0 0.0
    %1868 = vmatprep.subr.mxu0 0.0
    %1869 = vmatpush1.msra.mxu0 0.0
    %1870 = vmatprep.subr.mxu0 0.0
    %1871 = vmatpush1.msra.mxu0 0.0
    %1872 = vmatprep.subr.mxu0 0.0
    %1873 = vmatpush1.msra.mxu0 0.0
    %1874 = vmatprep.subr.mxu0 0.0
    %1875 = vmatpush1.msra.mxu0 0.0
    %1876 = vmatprep.subr.mxu0 0.0
    %1877 = vmatpush1.msra.mxu0 0.0
    %1878 = vmatprep.subr.mxu0 0.0
    %1879 = vmatpush1.msra.mxu0 0.0
    %1880 = vmatprep.subr.mxu0 0.0
    %1881 = vmatpush1.msra.mxu0 0.0
    %1882 = vmatprep.subr.mxu0 0.0
    %1883 = vmatpush1.msra.mxu0 0.0
    %1884 = vmatprep.subr.mxu0 0.0
    %1885 = vmatpush1.msra.mxu0 0.0
    %1886 = vmatprep.subr.mxu0 0.0
    %1887 = vmatpush1.msra.mxu0 0.0
    %1888 = vmatprep.subr.mxu0 0.0
    %1889 = vmatpush1.msra.mxu0 0.0
    %1890 = vmatprep.subr.mxu0 0.0
    %1891 = vmatpush1.msra.mxu0 0.0
    %1892 = vmatprep.subr.mxu0 0.0
    %1893 = vmatpush1.msra.mxu0 0.0
    %1894 = vmatprep.subr.mxu0 0.0
    %1895 = vmatpush1.msra.mxu0 0.0
    %1896 = vmatprep.subr.mxu0 0.0
    %1897 = vmatpush1.msra.mxu0 0.0
    %1898 = vmatprep.subr.mxu0 0.0
    %1899 = vmatpush1.msra.mxu0 0.0
    %1900 = vmatprep.subr.mxu0 0.0
    %1901 = vmatpush1.msra.mxu0 0.0
    %1902 = vmatprep.subr.mxu0 0.0
    %1903 = vmatpush1.msra.mxu0 0.0
    %1904 = vmatprep.subr.mxu0 0.0
    %1905 = vmatpush1.msra.mxu0 0.0
    %1906 = vmatprep.subr.mxu0 0.0
    %1907 = vmatpush1.msra.mxu0 0.0
    %1908 = vmatprep.subr.mxu0 0.0
    %1909 = vmatpush1.msra.mxu0 0.0
    %1910 = vmatprep.mubr.f32.mxu0 0.0
    %1911 = vmatmul.mubr.f32.gmra.mrb[0].mxu0 %v1844
    %v1912 = vpop.f32.mrb[0].mxu0
    %v1913 = vadd.f32 %v1839, %v1912
    %v1914 = vpop.f32.mrb[0].mxu0
    %1915 = vdwg.mxu0
    %v1916 = vtanh.pop %v1913
    %1917 = vst.msk [vmem:[#allocation2 + $0xe] sm:$0x3] %vm427, %v1916
    %vm1918 = vcmask 261126
    %1919 = vst.msk [vmem:[#allocation3 - $0x6] sm:$0xc0] %vm1918, %v1623
    %s1920 = scalar_lea.vmem [#allocation3], 2
    %1921 = vst.msk [vmem:[%s1920] sm:$0x3] %vm427, %v1916
    %v1922 = vld [vmem:[#allocation2] sm:$0xff]
    %v1923 = vld [vmem:[#allocation2 + $0x8] sm:$0xff]
    %v1924 = vld [vmem:[%s5] sm:$0xff]
    %v1925 = vld [vmem:[%s5 + $0x8] sm:$0xff]
    %v1926 = vld [vmem:[%s5 + $0x10] sm:$0xff]
    %v1927 = vld [vmem:[%s5 + $0x18] sm:$0xff]
    %v1929 = vsel %vm45, %v1922, 0
    %v1932 = vsel %vm45, %v1923, 0
    %1934 = vmatprep.subr.mxu0 0.0
    %1935 = vmatpush1.msra.mxu0 %v1924
    %1936 = vmatprep.subr.mxu0 0.0
    %1937 = vmatpush1.msra.mxu0 %v1925
    %1938 = vmatprep.subr.mxu0 0.0
    %1939 = vmatpush1.msra.mxu0 %v1926
    %1940 = vmatprep.subr.mxu0 0.0
    %1941 = vmatpush1.msra.mxu0 %v1927
    %1942 = vmatprep.subr.mxu0 0.0
    %1943 = vmatpush1.msra.mxu0 0.0
    %1944 = vmatprep.subr.mxu0 0.0
    %1945 = vmatpush1.msra.mxu0 0.0
    %1946 = vmatprep.subr.mxu0 0.0
    %1947 = vmatpush1.msra.mxu0 0.0
    %1948 = vmatprep.subr.mxu0 0.0
    %1949 = vmatpush1.msra.mxu0 0.0
    %1950 = vmatprep.subr.mxu0 0.0
    %1951 = vmatpush1.msra.mxu0 0.0
    %1952 = vmatprep.subr.mxu0 0.0
    %1953 = vmatpush1.msra.mxu0 0.0
    %1954 = vmatprep.subr.mxu0 0.0
    %1955 = vmatpush1.msra.mxu0 0.0
    %1956 = vmatprep.subr.mxu0 0.0
    %1957 = vmatpush1.msra.mxu0 0.0
    %1958 = vmatprep.subr.mxu0 0.0
    %1959 = vmatpush1.msra.mxu0 0.0
    %1960 = vmatprep.subr.mxu0 0.0
    %1961 = vmatpush1.msra.mxu0 0.0
    %1962 = vmatprep.subr.mxu0 0.0
    %1963 = vmatpush1.msra.mxu0 0.0
    %1964 = vmatprep.subr.mxu0 0.0
    %1965 = vmatpush1.msra.mxu0 0.0
    %1966 = vmatprep.subr.mxu0 0.0
    %1967 = vmatpush1.msra.mxu0 0.0
    %1968 = vmatprep.subr.mxu0 0.0
    %1969 = vmatpush1.msra.mxu0 0.0
    %1970 = vmatprep.subr.mxu0 0.0
    %1971 = vmatpush1.msra.mxu0 0.0
    %1972 = vmatprep.subr.mxu0 0.0
    %1973 = vmatpush1.msra.mxu0 0.0
    %1974 = vmatprep.subr.mxu0 0.0
    %1975 = vmatpush1.msra.mxu0 0.0
    %1976 = vmatprep.subr.mxu0 0.0
    %1977 = vmatpush1.msra.mxu0 0.0
    %1978 = vmatprep.subr.mxu0 0.0
    %1979 = vmatpush1.msra.mxu0 0.0
    %1980 = vmatprep.subr.mxu0 0.0
    %1981 = vmatpush1.msra.mxu0 0.0
    %1982 = vmatprep.subr.mxu0 0.0
    %1983 = vmatpush1.msra.mxu0 0.0
    %1984 = vmatprep.subr.mxu0 0.0
    %1985 = vmatpush1.msra.mxu0 0.0
    %1986 = vmatprep.subr.mxu0 0.0
    %1987 = vmatpush1.msra.mxu0 0.0
    %1988 = vmatprep.subr.mxu0 0.0
    %1989 = vmatpush1.msra.mxu0 0.0
    %1990 = vmatprep.subr.mxu0 0.0
    %1991 = vmatpush1.msra.mxu0 0.0
    %1992 = vmatprep.subr.mxu0 0.0
    %1993 = vmatpush1.msra.mxu0 0.0
    %1994 = vmatprep.subr.mxu0 0.0
    %1995 = vmatpush1.msra.mxu0 0.0
    %1996 = vmatprep.subr.mxu0 0.0
    %1997 = vmatpush1.msra.mxu0 0.0
    %1998 = vmatprep.mubr.f32.mxu0 0.0
    %1999 = vmatmul.mubr.f32.gmra.mrb[0].mxu0 %v1929
    %v2000 = vpop.f32.mrb[0].mxu0
    %v2001 = vadd.f32 0.0, %v2000
    %v2002 = vpop.f32.mrb[0].mxu0
    %2003 = vmatprep.mubr.f32.mxu0 0.0
    %2004 = vmatmul.mubr.f32.gmra.mrb[0].mxu0 %v1932
    %v2005 = vpop.f32.mrb[0].mxu0
    %v2006 = vadd.f32 0.0, %v2005
    %v2007 = vpop.f32.mrb[0].mxu0
    %2008 = vdwg.mxu0
    %v2009 = vsel %vm45, %v2001, -inf
    %2010 = vmax.xlane.f32.xlu0 %v2009
    %v2011 = vpop.xlane.xlu0 %2010
    %v2012 = vsel %vm45, %v2006, -inf
    %2013 = vmax.xlane.f32.xlu0 %v2012
    %v2014 = vpop.xlane.xlu0 %2013
    %v2015 = vsub.f32 %v2001, %v2011
    %v2016 = vsub.f32 %v2006, %v2014
    %v2017 = vmul.f32 %v2015, 1.442695
    %v2018 = vpow.pop %v2017
    %v2019 = vmul.f32 %v2016, 1.442695
    %v2020 = vpow.pop %v2019
    %v2021 = vsel %vm45, %v2018, 0.0
    %2022 = vadd.xlane.f32.xlu0 %v2021
    %v2023 = vpop.xlane.xlu0 %2022
    %v2024 = vsel %vm45, %v2020, 0.0
    %2025 = vadd.xlane.f32.xlu0 %v2024
    %v2026 = vpop.xlane.xlu0 %2025
    %v2027 = vrcp.pop %v2023
    %v2028 = vrcp.pop %v2026
    %v2029 = vmul.f32 %v2023, %v2027
    %v2030 = vmul.f32 %v2026, %v2028
    %v2031 = vsub.f32 2.0, %v2029
    %v2032 = vsub.f32 2.0, %v2030
    %v2033 = vmul.f32 %v2027, %v2031
    %v2034 = vmul.f32 %v2028, %v2032
    %v2035 = vmul.f32 %v2018, %v2033
    %v2036 = vmul.f32 %v2020, %v2034
    %2037 = vst.msk [vmem:[%s6] sm:$0xff] %vm45, %v2035
    %2038 = vst.msk [vmem:[%s6 + $0x8] sm:$0xff] %vm45, %v2036
    // Predicated region
    $region26: #{rnnlm_forward.1} parent=1 // pred_check
      _
    $region27: #{rnnlm_forward.1} parent=1 // pred_check_branch
      %2040 = sbr.rel (0) target = $region29
    $region28: #{rnnlm_forward.1} parent=1 // pred_region
      _
    $region29: #{rnnlm_forward.1} parent=1 // pred_fallthru
      _
    // Predicated region
    $region30: #{rnnlm_forward.1} parent=1 // pred_check
      _
    $region31: #{rnnlm_forward.1} parent=1 // pred_check_branch
      %2042 = sbr.rel (0) target = $region33
    $region32: #{rnnlm_forward.1} parent=1 // pred_region
      %s2044 = ssub.s32 64, 64
      %2045 = vsyncadd [#allocation4], %s2044
      %s2046 = sshll.u32 [#allocation3], 4
      %s2047 = int_to_ptr.vmem [resolvable:$true] %s2046
      %2052 = dma.vmem_to_hbm [thread:$0]  %s2047, 64, %s7, [#allocation4], 32, 32, 2
    $region33: #{rnnlm_forward.1} parent=1 // pred_fallthru
      _
    // Predicated region
    $region34: #{rnnlm_forward.1} parent=1 // pred_check
      _
    $region35: #{rnnlm_forward.1} parent=1 // pred_check_branch
      %2054 = sbr.rel (0) target = $region37
    $region36: #{rnnlm_forward.1} parent=1 // pred_region
      _
    $region37: #{rnnlm_forward.1} parent=1 // pred_fallthru
      _
    // Predicated region
    $region38: #{rnnlm_forward.1} parent=1 // pred_check
      _
    $region39: #{rnnlm_forward.1} parent=1 // pred_check_branch
      %2056 = sbr.rel (0) target = $region41
    $region40: #{rnnlm_forward.1} parent=1 // pred_region
      %2057 = dma.done [#allocation4], 64
    $region41: #{rnnlm_forward.1} parent=1 // pred_fallthru
      _
    %2058 = vsyncpa [#allocation4], 1

</llo_original>
